<compile_context>
chip_gen: v7x
topology: tpu7x:2x2x1
jax: 0.10.0
libtpu: 0.0.40
codegen_flags: <defaults>
</compile_context>

<pallas_src>
import functools

import jax
import jax.numpy as jnp
from jax.experimental import pallas as pl
from jax.experimental.pallas import tpu as pltpu


def _pick_tile(dim, pref, align):
    """Largest tile <= pref that divides `dim` and is a multiple of `align`;
    falls back to the full dimension (always a legal block size)."""
    if dim <= pref:
        return dim
    t = (pref // align) * align
    while t >= align:
        if dim % t == 0:
            return t
        t -= align
    return dim


# ----------------------------------------------------------------------------
# Kernel 1 (only used when F_in > 128): hoisted feature transform
#   seq_fts = x2d @ W_gcn      (f32 in, cast to bf16 in-kernel, bf16 out)
# ----------------------------------------------------------------------------
def seq_fts_kernel(x_ref, w_ref, o_ref):
    x = x_ref[...].astype(jnp.bfloat16)
    o_ref[...] = jnp.dot(x, w_ref[...],
                         preferred_element_type=jnp.float32).astype(o_ref.dtype)


def seq_fts_forward(x2d_f32, w_bf16):
    M, Fin = x2d_f32.shape
    Fout = w_bf16.shape[1]
    tm = _pick_tile(M, 1024, 8)   # HBM-bound: big row tiles
    return pl.pallas_call(
        seq_fts_kernel,
        out_shape=jax.ShapeDtypeStruct((M, Fout), jnp.bfloat16),
        grid=(M // tm,),
        in_specs=[
            pl.BlockSpec((tm, Fin), lambda i: (i, 0)),
            pl.BlockSpec((Fin, Fout), lambda i: (0, 0)),
        ],
        out_specs=pl.BlockSpec((tm, Fout), lambda i: (i, 0)),
        compiler_params=pltpu.CompilerParams(
            dimension_semantics=("parallel",)),
    )(x2d_f32, w_bf16)


# ----------------------------------------------------------------------------
# Kernel 2: tiled adjacency aggregation + GCN bias + PReLU, fused with
#           projector Linear1 AND the BatchNorm partial statistics.
#   h[b] = PReLU(adj[b] @ seq_fts[b] + bg) @ W1 + b1
#   stats[b, m] = [sum_rows(h_tile), sum_rows(h_tile^2)]
# ----------------------------------------------------------------------------
def _gcn_step(k, part, acc_ref, alpha, bg_ref, w1_ref, b1_ref, o_ref, stats_ref):
    @pl.when(k == 0)
    def _():
        acc_ref[...] = part           # direct write, no zero-fill pass

    @pl.when(k > 0)
    def _():
        acc_ref[...] += part

    @pl.when(k == pl.num_programs(2) - 1)
    def _():
        act = acc_ref[...] + bg_ref[...]
        act = jnp.where(act > 0, act, alpha * act)                     # PReLU
        h = jnp.dot(act.astype(jnp.bfloat16), w1_ref[...],
                    preferred_element_type=jnp.float32) + b1_ref[...]  # Linear1
        o_ref[0] = h
        # Fused BN partial statistics (rows already live in vregs).
        stats_ref[0, 0] = jnp.concatenate(
            [jnp.sum(h, axis=0, keepdims=True),
             jnp.sum(h * h, axis=0, keepdims=True)], axis=0)


def gcn_fused_kernel(alpha_ref, adj_ref, x_ref, wg_ref, bg_ref, w1_ref, b1_ref,
                     o_ref, stats_ref, acc_ref):
    """Feature transform fused in: seq_fts tile computed on the fly (Fin small)."""
    k = pl.program_id(2)
    s_tile = jnp.dot(x_ref[0].astype(jnp.bfloat16), wg_ref[...],
                     preferred_element_type=jnp.float32).astype(jnp.bfloat16)
    part = jnp.dot(adj_ref[0].astype(jnp.bfloat16), s_tile,
                   preferred_element_type=jnp.float32)
    _gcn_step(k, part, acc_ref, alpha_ref[0], bg_ref, w1_ref, b1_ref,
              o_ref, stats_ref)


def gcn_seq_kernel(alpha_ref, adj_ref, s_ref, bg_ref, w1_ref, b1_ref,
                   o_ref, stats_ref, acc_ref, *, tk, resident):
    """Precomputed seq_fts; resident => whole seq_fts[b] lives in VMEM."""
    k = pl.program_id(2)
    if resident:
        start = k * tk
        if tk % 128 == 0:
            start = pl.multiple_of(start, 128)
        s_tile = s_ref[0, pl.ds(start, tk), :]
    else:
        s_tile = s_ref[0]
    part = jnp.dot(adj_ref[0].astype(jnp.bfloat16), s_tile,
                   preferred_element_type=jnp.float32)
    _gcn_step(k, part, acc_ref, alpha_ref[0], bg_ref, w1_ref, b1_ref,
              o_ref, stats_ref)


def gcn_block_forward(params, adj, in_feats):
    """Returns (h (B,N,H) f32, stats (B, N//tm, 2, H) f32 partial BN sums)."""
    B, N, Fin = in_feats.shape
    Fout = params["gcn_w"].shape[1]          # 512
    H = params["p_w1"].shape[1]

    w_gcn_bf16 = params["gcn_w"].astype(jnp.bfloat16)
    w1_bf16 = params["p_w1"].astype(jnp.bfloat16)

    tm = _pick_tile(N, 256, 8)
    tk = _pick_tile(N, 512, 128)
    mt = N // tm

    out_shapes = (jax.ShapeDtypeStruct((B, N, H), jnp.float32),
                  jax.ShapeDtypeStruct((B, mt, 2, H), jnp.float32))
    out_specs = (pl.BlockSpec((1, tm, H), lambda b, m, k: (b, m, 0)),
                 pl.BlockSpec((1, 1, 2, H), lambda b, m, k: (b, m, 0, 0)))
    scratch = [pltpu.VMEM((tm, Fout), jnp.float32)]
    adj_spec = pl.BlockSpec((1, tm, tk), lambda b, m, k: (b, m, k))  # f32, cast in-kernel
    alpha_spec = pl.BlockSpec(memory_space=pltpu.MemorySpace.SMEM)
    tail_specs = [
        pl.BlockSpec((1, Fout), lambda b, m, k: (0, 0)),             # gcn bias
        pl.BlockSpec((Fout, H), lambda b, m, k: (0, 0)),             # W1
        pl.BlockSpec((1, H), lambda b, m, k: (0, 0)),                # b1
    ]
    # 32 MiB scoped VMEM is enough for every path below and is safe on
    # v5e/v6e/v7x alike (v7x physical is 64 MiB per TC).
    # Note (v7x): B * (N//tm) should ideally be even so both TensorCores get
    # equal work along the 'parallel' grid axes.
    cp = pltpu.CompilerParams(
        dimension_semantics=("parallel", "parallel", "arbitrary"),
        vmem_limit_bytes=32 * 1024 * 1024)

    if Fin <= 128:
        # Fuse the feature transform: stream x (Fin-wide) instead of a
        # 512-wide seq_fts, delete K1 entirely.
        in_specs = [
            alpha_spec, adj_spec,
            pl.BlockSpec((1, tk, Fin), lambda b, m, k: (b, k, 0)),   # x (f32)
            pl.BlockSpec((Fin, Fout), lambda b, m, k: (0, 0)),       # W_gcn
        ] + tail_specs
        return pl.pallas_call(
            gcn_fused_kernel,
            out_shape=out_shapes,
            grid=(B, mt, N // tk),
            in_specs=in_specs,
            out_specs=out_specs,
            scratch_shapes=scratch,
            compiler_params=cp,
        )(params["gcn_alpha"], adj, in_feats, w_gcn_bf16,
          params["gcn_b"], w1_bf16, params["p_b1"])

    # Large Fin: one big hoisted GEMM, then keep seq_fts[b] resident in VMEM
    # (DMA'd once per batch element instead of once per m tile).
    seq = seq_fts_forward(in_feats.reshape(B * N, Fin), w_gcn_bf16)   # bf16
    seq3 = seq.reshape(B, N, Fout)
    resident = 2 * N * Fout * 2 <= 12 * 1024 * 1024   # double-buffered bf16 budget
    if resident:
        seq_spec = pl.BlockSpec((1, N, Fout), lambda b, m, k: (b, 0, 0))
    else:
        seq_spec = pl.BlockSpec((1, tk, Fout), lambda b, m, k: (b, k, 0))
    in_specs = [alpha_spec, adj_spec, seq_spec] + tail_specs
    kernel = functools.partial(gcn_seq_kernel, tk=tk, resident=resident)
    return pl.pallas_call(
        kernel,
        out_shape=out_shapes,
        grid=(B, mt, N // tk),
        in_specs=in_specs,
        out_specs=out_specs,
        scratch_shapes=scratch,
        compiler_params=cp,
    )(params["gcn_alpha"], adj, seq3, params["gcn_b"], w1_bf16, params["p_b1"])


# ----------------------------------------------------------------------------
# Kernel 4: BN normalize (global stats) + PReLU + Linear2, row-tiled.
# ----------------------------------------------------------------------------
def projector_out_kernel(alpha_ref, h_ref, mean_ref, var_ref, gamma_ref,
                         beta_ref, w2_ref, b2_ref, o_ref):
    h = h_ref[...]
    hn = (h - mean_ref[...]) * jax.lax.rsqrt(var_ref[...] + 1e-5)
    hn = hn * gamma_ref[...] + beta_ref[...]
    alpha = alpha_ref[0]
    hp = jnp.where(hn > 0, hn, alpha * hn)
    o_ref[...] = (jnp.dot(hp.astype(jnp.bfloat16), w2_ref[...],
                          preferred_element_type=jnp.float32) + b2_ref[...])


def projector_out_forward(h2d, mean, var, gamma, beta, w2_bf16, b2, alpha):
    M, H = h2d.shape
    P = w2_bf16.shape[1]
    tm = _pick_tile(M, 1024, 8)   # HBM-bound: big row tiles
    return pl.pallas_call(
        projector_out_kernel,
        out_shape=jax.ShapeDtypeStruct((M, P), jnp.float32),
        grid=(M // tm,),
        in_specs=[
            pl.BlockSpec(memory_space=pltpu.MemorySpace.SMEM),   # alpha
            pl.BlockSpec((tm, H), lambda i: (i, 0)),             # h tile
            pl.BlockSpec((1, H), lambda i: (0, 0)),              # mean
            pl.BlockSpec((1, H), lambda i: (0, 0)),              # var
            pl.BlockSpec((1, H), lambda i: (0, 0)),              # gamma
            pl.BlockSpec((1, H), lambda i: (0, 0)),              # beta
            pl.BlockSpec((H, P), lambda i: (0, 0)),              # W2
            pl.BlockSpec((1, P), lambda i: (0, 0)),              # b2
        ],
        out_specs=pl.BlockSpec((tm, P), lambda i: (i, 0)),
        compiler_params=pltpu.CompilerParams(
            dimension_semantics=("parallel",)),
    )(alpha, h2d, mean, var, gamma, beta, w2_bf16, b2)


# ----------------------------------------------------------------------------
# GraphEncoder forward (glue in plain JAX)
# ----------------------------------------------------------------------------
def graph_encoder_forward(params, adj, in_feats, sparse=False):
    assert not sparse  # TODO(synk): sparse torch.spmm path not implemented
    B, N, _ = in_feats.shape

    # (1)+(2)+(3a) GCN aggregation + PReLU + Linear1 + BN partial sums
    h, stats = gcn_block_forward(params, adj, in_feats)
    h2d = h.reshape(B * N, h.shape[-1])                             # f32

    # (3b) finish BatchNorm1d batch statistics (tiny reduction, plain JAX).
    m_total = float(B * N)
    sums = jnp.sum(stats, axis=(0, 1))                              # (2, H)
    mean = (sums[0] / m_total)[None, :]
    var = jnp.maximum(sums[1] / m_total - mean[0] * mean[0], 0.0)[None, :]

    # (4) normalize + PReLU + Linear2
    w2_bf16 = params["p_w2"].astype(jnp.bfloat16)
    proj = projector_out_forward(h2d, mean, var,
                                 params["p_gamma"], params["p_beta"],
                                 w2_bf16, params["p_b2"], params["p_alpha"])
    return proj


def init_params(key, f_in, gcn_out=512, proj_hidden=128, proj_out=128):
    ks = jax.random.split(key, 4)
    return {
        # GCN: fc(f_in, 512, bias=False) -> adj @ . -> +bias -> PReLU(0.25)
        "gcn_w": (jax.random.normal(ks[0], (f_in, gcn_out), jnp.float32)
                  * (1.0 / jnp.sqrt(f_in))),
        "gcn_b": jnp.zeros((1, gcn_out), jnp.float32),
        "gcn_alpha": jnp.array([0.25], jnp.float32),
        # Projector MLP(512, proj_out, proj_hidden)
        "p_w1": (jax.random.normal(ks[1], (gcn_out, proj_hidden), jnp.float32)
                 * (1.0 / jnp.sqrt(gcn_out))),
        "p_b1": jnp.zeros((1, proj_hidden), jnp.float32),
        "p_gamma": jnp.ones((1, proj_hidden), jnp.float32),
        "p_beta": jnp.zeros((1, proj_hidden), jnp.float32),
        "p_alpha": jnp.array([0.25], jnp.float32),
        "p_w2": (jax.random.normal(ks[2], (proj_hidden, proj_out), jnp.float32)
                 * (1.0 / jnp.sqrt(proj_hidden))),
        "p_b2": jnp.zeros((1, proj_out), jnp.float32),
    }


# ----------------------------------------------------------------------------
# Pure-JAX reference (matches torch semantics in f32) for validation.
# ----------------------------------------------------------------------------
def _reference_forward(params, adj, in_feats):
    B, N, Fin = in_feats.shape
    seq = in_feats.reshape(B * N, Fin) @ params["gcn_w"]
    seq = seq.reshape(B, N, -1)
    agg = jnp.einsum("bij,bjf->bif", adj, seq) + params["gcn_b"]
    a = params["gcn_alpha"][0]
    act = jnp.where(agg > 0, agg, a * agg).reshape(B * N, -1)
    h = act @ params["p_w1"] + params["p_b1"]
    mean = jnp.mean(h, axis=0, keepdims=True)
    var = jnp.mean((h - mean) ** 2, axis=0, keepdims=True)   # biased
    hn = (h - mean) * jax.lax.rsqrt(var + 1e-5) * params["p_gamma"] + params["p_beta"]
    pa = params["p_alpha"][0]
    hp = jnp.where(hn > 0, hn, pa * hn)
    return hp @ params["p_w2"] + params["p_b2"]


def _make_inputs(key, B, N, Fin):
    k_adj, k_x = jax.random.split(key)
    a = jax.random.uniform(k_adj, (B, N, N), jnp.float32)
    a = (a + jnp.swapaxes(a, 1, 2)) * 0.5 + jnp.eye(N, dtype=jnp.float32)[None]
    adj = a / jnp.sum(a, axis=-1, keepdims=True)
    x = jax.random.normal(k_x, (B, N, Fin), jnp.float32)
    return adj, x


if __name__ == "__main__":
    PROJ_HIDDEN, PROJ_OUT = 128, 128
    key = jax.random.PRNGKey(0)
    k_in, k_p, k_in2, k_p2 = jax.random.split(key, 4)

    # ---- Test 1: small shapes, fused feature-transform path (Fin <= 128) ----
    B, N, F_IN = 2, 16, 32
    adj, in_feats = _make_inputs(k_in, B, N, F_IN)
    params = init_params(k_p, F_IN, 512, PROJ_HIDDEN, PROJ_OUT)

    projections = jax.block_until_ready(
        graph_encoder_forward(params, adj, in_feats, sparse=False))
    assert projections.shape == (B * N, PROJ_OUT)
    assert projections.dtype == jnp.float32
    assert bool(jnp.all(jnp.isfinite(projections)))
    ref = _reference_forward(params, adj, in_feats)
    err = float(jnp.max(jnp.abs(projections - ref)))
    scale = float(jnp.max(jnp.abs(ref)))
    assert err <= 5e-2 * scale + 5e-2, (err, scale)

    # ---- Test 2: larger Fin -> hoisted seq_fts + resident-VMEM path -------
    B2, N2, F_IN2 = 2, 768, 256
    adj2, in_feats2 = _make_inputs(k_in2, B2, N2, F_IN2)
    params2 = init_params(k_p2, F_IN2, 512, PROJ_HIDDEN, PROJ_OUT)

    proj2 = jax.block_until_ready(
        graph_encoder_forward(params2, adj2, in_feats2, sparse=False))
    assert proj2.shape == (B2 * N2, PROJ_OUT)
    assert bool(jnp.all(jnp.isfinite(proj2)))
    ref2 = _reference_forward(params2, adj2, in_feats2)
    err2 = float(jnp.max(jnp.abs(proj2 - ref2)))
    scale2 = float(jnp.max(jnp.abs(ref2)))
    assert err2 <= 5e-2 * scale2 + 5e-2, (err2, scale2)

    print("KERNEL_OK")
</pallas_src>

<mosaic_0001>
module attributes {stable_mosaic.version = 11 : i64} {
  func.func @gcn_fused_kernel(%arg0: i32, %arg1: i32, %arg2: i32, %arg3: memref<1xf32, #tpu.memory_space<smem>>, %arg4: memref<1x16x16xf32, #tpu.memory_space<vmem>>, %arg5: memref<1x16x32xf32, #tpu.memory_space<vmem>>, %arg6: memref<32x512xbf16, #tpu.memory_space<vmem>>, %arg7: memref<1x512xf32, #tpu.memory_space<vmem>>, %arg8: memref<512x128xbf16, #tpu.memory_space<vmem>>, %arg9: memref<1x128xf32, #tpu.memory_space<vmem>>, %arg10: memref<1x16x128xf32, #tpu.memory_space<vmem>>, %arg11: memref<1x1x2x128xf32, #tpu.memory_space<vmem>>, %arg12: memref<16x512xf32, #tpu.memory_space<vmem>>) attributes {dimension_semantics = [#tpu.dimension_semantics<parallel>, #tpu.dimension_semantics<parallel>, #tpu.dimension_semantics<arbitrary>], iteration_bounds = array<i64: 2, 1, 1>, scalar_prefetch = 0 : i64, scratch_operands = 1 : i64, tpu.core_type = #tpu.core_type<tc>, window_params = [{transform_indices = @transform_0, window_bounds = array<i64: 1>}, {transform_indices = @transform_1, window_bounds = array<i64: 1, 16, 16>}, {transform_indices = @transform_2, window_bounds = array<i64: 1, 16, 32>}, {pipeline_mode = #tpu.pipeline_mode<synchronous>, transform_indices = @transform_3, window_bounds = array<i64: 32, 512>}, {pipeline_mode = #tpu.pipeline_mode<synchronous>, transform_indices = @transform_4, window_bounds = array<i64: 1, 512>}, {pipeline_mode = #tpu.pipeline_mode<synchronous>, transform_indices = @transform_5, window_bounds = array<i64: 512, 128>}, {pipeline_mode = #tpu.pipeline_mode<synchronous>, transform_indices = @transform_6, window_bounds = array<i64: 1, 128>}, {transform_indices = @transform_7, window_bounds = array<i64: 1, 16, 128>}, {transform_indices = @transform_8, window_bounds = array<i64: 1, 1, 2, 128>}]} {
    %c0 = arith.constant 0 : index
    %c0_0 = arith.constant 0 : index
    %c0_1 = arith.constant 0 : index
    %0 = vector.load %arg5[%c0, %c0_0, %c0_1] : memref<1x16x32xf32, #tpu.memory_space<vmem>>, vector<1x16x32xf32>
    %1 = vector.shape_cast %0 : vector<1x16x32xf32> to vector<16x32xf32>
    %2 = arith.truncf %1 : vector<16x32xf32> to vector<16x32xbf16>
    %c0_2 = arith.constant 0 : index
    %c0_3 = arith.constant 0 : index
    %3 = vector.load %arg6[%c0_2, %c0_3] : memref<32x512xbf16, #tpu.memory_space<vmem>>, vector<32x512xbf16>
    %cst = arith.constant dense<0.000000e+00> : vector<16x512xf32>
    %4 = tpu.matmul %2, %3, %cst {dimension_numbers = #tpu.dot_dimension_numbers<[1], [0], [0], [1], [0, 0, 1, 1], [], []>} : vector<16x32xbf16>, vector<32x512xbf16>, vector<16x512xf32> -> vector<16x512xf32>
    %5 = arith.truncf %4 : vector<16x512xf32> to vector<16x512xbf16>
    %c0_4 = arith.constant 0 : index
    %c0_5 = arith.constant 0 : index
    %c0_6 = arith.constant 0 : index
    %6 = vector.load %arg4[%c0_4, %c0_5, %c0_6] : memref<1x16x16xf32, #tpu.memory_space<vmem>>, vector<1x16x16xf32>
    %7 = vector.shape_cast %6 : vector<1x16x16xf32> to vector<16x16xf32>
    %8 = arith.truncf %7 : vector<16x16xf32> to vector<16x16xbf16>
    %cst_7 = arith.constant dense<0.000000e+00> : vector<16x512xf32>
    %9 = tpu.matmul %8, %5, %cst_7 {dimension_numbers = #tpu.dot_dimension_numbers<[1], [0], [0], [1], [0, 0, 1, 1], [], []>} : vector<16x16xbf16>, vector<16x512xbf16>, vector<16x512xf32> -> vector<16x512xf32>
    %c0_8 = arith.constant 0 : index
    %10 = memref.load %arg3[%c0_8] : memref<1xf32, #tpu.memory_space<smem>>
    %c0_i32 = arith.constant 0 : i32
    %11 = arith.cmpi eq, %arg2, %c0_i32 : i32
    %12 = arith.extui %11 : i1 to i32
    %c0_i32_9 = arith.constant 0 : i32
    %13 = arith.cmpi ne, %12, %c0_i32_9 : i32
    scf.if %13 {
      %c0_14 = arith.constant 0 : index
      %c0_15 = arith.constant 0 : index
      %20 = vector.load %arg12[%c0_14, %c0_15] : memref<16x512xf32, #tpu.memory_space<vmem>>, vector<16x512xf32>
      tpu.vector_store %arg12[%c0_14, %c0_15], %9 {strides = array<i32>} : memref<16x512xf32, #tpu.memory_space<vmem>>, vector<16x512xf32>,
    } else {
    }
    %c0_i32_10 = arith.constant 0 : i32
    %14 = arith.cmpi sgt, %arg2, %c0_i32_10 : i32
    %15 = arith.extui %14 : i1 to i32
    %c0_i32_11 = arith.constant 0 : i32
    %16 = arith.cmpi ne, %15, %c0_i32_11 : i32
    scf.if %16 {
      %c0_14 = arith.constant 0 : index
      %c0_15 = arith.constant 0 : index
      %20 = vector.load %arg12[%c0_14, %c0_15] : memref<16x512xf32, #tpu.memory_space<vmem>>, vector<16x512xf32>
      %21 = arith.addf %20, %9 : vector<16x512xf32>
      %c0_16 = arith.constant 0 : index
      %c0_17 = arith.constant 0 : index
      %22 = vector.load %arg12[%c0_16, %c0_17] : memref<16x512xf32, #tpu.memory_space<vmem>>, vector<16x512xf32>
      tpu.vector_store %arg12[%c0_16, %c0_17], %21 {strides = array<i32>} : memref<16x512xf32, #tpu.memory_space<vmem>>, vector<16x512xf32>,
    } else {
    }
    %c0_i32_12 = arith.constant 0 : i32
    %17 = arith.cmpi eq, %arg2, %c0_i32_12 : i32
    %18 = arith.extui %17 : i1 to i32
    %c0_i32_13 = arith.constant 0 : i32
    %19 = arith.cmpi ne, %18, %c0_i32_13 : i32
    scf.if %19 {
      %c0_14 = arith.constant 0 : index
      %c0_15 = arith.constant 0 : index
      %20 = vector.load %arg12[%c0_14, %c0_15] : memref<16x512xf32, #tpu.memory_space<vmem>>, vector<16x512xf32>
      %c0_16 = arith.constant 0 : index
      %c0_17 = arith.constant 0 : index
      %21 = vector.load %arg7[%c0_16, %c0_17] : memref<1x512xf32, #tpu.memory_space<vmem>>, vector<1x512xf32>
      %22 = vector.broadcast %21 : vector<1x512xf32> to vector<16x512xf32>
      %23 = arith.addf %20, %22 : vector<16x512xf32>
      %cst_18 = arith.constant 0.000000e+00 : f32
      %24 = vector.broadcast %cst_18 : f32 to vector<16x512xf32>
      %25 = arith.cmpf ogt, %23, %24 : vector<16x512xf32>
      %26 = vector.broadcast %10 : f32 to vector<16x512xf32>
      %27 = arith.mulf %26, %23 : vector<16x512xf32>
      %28 = arith.select %25, %23, %27 : vector<16x512xi1>, vector<16x512xf32>
      %29 = arith.truncf %28 : vector<16x512xf32> to vector<16x512xbf16>
      %c0_19 = arith.constant 0 : index
      %c0_20 = arith.constant 0 : index
      %30 = vector.load %arg8[%c0_19, %c0_20] : memref<512x128xbf16, #tpu.memory_space<vmem>>, vector<512x128xbf16>
      %cst_21 = arith.constant dense<0.000000e+00> : vector<16x128xf32>
      %31 = tpu.matmul %29, %30, %cst_21 {dimension_numbers = #tpu.dot_dimension_numbers<[1], [0], [0], [1], [0, 0, 1, 1], [], []>} : vector<16x512xbf16>, vector<512x128xbf16>, vector<16x128xf32> -> vector<16x128xf32>
      %c0_22 = arith.constant 0 : index
      %c0_23 = arith.constant 0 : index
      %32 = vector.load %arg9[%c0_22, %c0_23] : memref<1x128xf32, #tpu.memory_space<vmem>>, vector<1x128xf32>
      %33 = vector.broadcast %32 : vector<1x128xf32> to vector<16x128xf32>
      %34 = arith.addf %31, %33 : vector<16x128xf32>
      %c0_24 = arith.constant 0 : index
      %c0_25 = arith.constant 0 : index
      %c0_26 = arith.constant 0 : index
      %35 = vector.load %arg10[%c0_24, %c0_25, %c0_26] : memref<1x16x128xf32, #tpu.memory_space<vmem>>, vector<1x16x128xf32>
      %36 = vector.shape_cast %35 : vector<1x16x128xf32> to vector<16x128xf32>
      %37 = vector.shape_cast %34 : vector<16x128xf32> to vector<1x16x128xf32>
      tpu.vector_store %arg10[%c0_24, %c0_25, %c0_26], %37 {strides = array<i32>} : memref<1x16x128xf32, #tpu.memory_space<vmem>>, vector<1x16x128xf32>,
      %cst_27 = arith.constant dense<0.000000e+00> : vector<128xf32>
      %38 = vector.multi_reduction <add>, %34, %cst_27 [0] : vector<16x128xf32> to vector<128xf32>
      %39 = vector.shape_cast %38 : vector<128xf32> to vector<1x128xf32>
      %40 = arith.mulf %34, %34 : vector<16x128xf32>
      %cst_28 = arith.constant dense<0.000000e+00> : vector<128xf32>
      %41 = vector.multi_reduction <add>, %40, %cst_28 [0] : vector<16x128xf32> to vector<128xf32>
      %42 = vector.shape_cast %41 : vector<128xf32> to vector<1x128xf32>
      %43 = tpu.concatenate %39, %42 in 0 : vector<1x128xf32>, vector<1x128xf32> -> vector<2x128xf32>
      %c0_29 = arith.constant 0 : index
      %c0_30 = arith.constant 0 : index
      %c0_31 = arith.constant 0 : index
      %c0_32 = arith.constant 0 : index
      %44 = vector.load %arg11[%c0_29, %c0_30, %c0_31, %c0_32] : memref<1x1x2x128xf32, #tpu.memory_space<vmem>>, vector<1x1x2x128xf32>
      %45 = vector.shape_cast %44 : vector<1x1x2x128xf32> to vector<2x128xf32>
      %46 = vector.shape_cast %43 : vector<2x128xf32> to vector<1x1x2x128xf32>
      tpu.vector_store %arg11[%c0_29, %c0_30, %c0_31, %c0_32], %46 {strides = array<i32>} : memref<1x1x2x128xf32, #tpu.memory_space<vmem>>, vector<1x1x2x128xf32>,
    } else {
    }
    return
  }
  func.func @transform_0(%arg0: i32, %arg1: i32, %arg2: i32) -> i32 {
    %c0_i32 = arith.constant 0 : i32
    %c0_i32_0 = arith.constant 0 : i32
    return %c0_i32 : i32
  }
  func.func @transform_1(%arg0: i32, %arg1: i32, %arg2: i32) -> (i32, i32, i32) {
    %c0_i32 = arith.constant 0 : i32
    return %arg0, %arg1, %arg2 : i32, i32, i32
  }
  func.func @transform_2(%arg0: i32, %arg1: i32, %arg2: i32) -> (i32, i32, i32) {
    %c0_i32 = arith.constant 0 : i32
    %c0_i32_0 = arith.constant 0 : i32
    return %arg0, %arg2, %c0_i32 : i32, i32, i32
  }
  func.func @transform_3(%arg0: i32, %arg1: i32, %arg2: i32) -> (i32, i32) {
    %c0_i32 = arith.constant 0 : i32
    %c0_i32_0 = arith.constant 0 : i32
    %c0_i32_1 = arith.constant 0 : i32
    return %c0_i32, %c0_i32_0 : i32, i32
  }
  func.func @transform_4(%arg0: i32, %arg1: i32, %arg2: i32) -> (i32, i32) {
    %c0_i32 = arith.constant 0 : i32
    %c0_i32_0 = arith.constant 0 : i32
    %c0_i32_1 = arith.constant 0 : i32
    return %c0_i32, %c0_i32_0 : i32, i32
  }
  func.func @transform_5(%arg0: i32, %arg1: i32, %arg2: i32) -> (i32, i32) {
    %c0_i32 = arith.constant 0 : i32
    %c0_i32_0 = arith.constant 0 : i32
    %c0_i32_1 = arith.constant 0 : i32
    return %c0_i32, %c0_i32_0 : i32, i32
  }
  func.func @transform_6(%arg0: i32, %arg1: i32, %arg2: i32) -> (i32, i32) {
    %c0_i32 = arith.constant 0 : i32
    %c0_i32_0 = arith.constant 0 : i32
    %c0_i32_1 = arith.constant 0 : i32
    return %c0_i32, %c0_i32_0 : i32, i32
  }
  func.func @transform_7(%arg0: i32, %arg1: i32, %arg2: i32) -> (i32, i32, i32) {
    %c0_i32 = arith.constant 0 : i32
    %c0_i32_0 = arith.constant 0 : i32
    return %arg0, %arg1, %c0_i32 : i32, i32, i32
  }
  func.func @transform_8(%arg0: i32, %arg1: i32, %arg2: i32) -> (i32, i32, i32, i32) {
    %c0_i32 = arith.constant 0 : i32
    %c0_i32_0 = arith.constant 0 : i32
    %c0_i32_1 = arith.constant 0 : i32
    return %arg0, %arg1, %c0_i32, %c0_i32_0 : i32, i32, i32, i32
  }
}

</mosaic_0001>

<llo_original>
// kernel: tpu_custom_call.1
$region0: #{tpu_custom_call.1}
  #allocation0 [shape = 'u32[]', space=smem, size = 0x4, offset = 0x4, fixed_abs, tag = 'smem constant byte address 0x4 - core index']
  #allocation1 [shape = 'u32[144,128]{1,0:T(1,128)}', space=vmem, size = 0x12000, scoped, tag = 'internal scratch']
  #allocation2 [shape = 'f32[16,512]{1,0:T(8,128)}', space=vmem, size = 0x8000, scoped, tag = 'scratch operand']
  #allocation3 [shape = 'f32[1]{0:T(128)S(6)}', space=smem, size = 0x200, scoped, tag = 'scoped memory for tpu_custom_call.1']
  %s0 = inlined_call_operand.<no memory space> [shape: f32[1], index: 0, kind: input, shape index: {}]
  %s1 = inlined_call_operand.hbm [shape: f32[2,16,16], index: 1, kind: input, shape index: {}]
  %s2 = inlined_call_operand.hbm [shape: f32[2,16,32], index: 2, kind: input, shape index: {}]
  %s3 = inlined_call_operand.hbm [shape: bf16[32,512], index: 3, kind: input, shape index: {}]
  %s4 = inlined_call_operand.vmem [shape: f32[1,512], index: 4, kind: input, shape index: {}]
  %s5 = inlined_call_operand.hbm [shape: bf16[512,128], index: 5, kind: input, shape index: {}]
  %s6 = inlined_call_operand.vmem [shape: f32[1,128], index: 6, kind: input, shape index: {}]
  %s7 = inlined_call_operand.hbm [shape: f32[2,16,128], index: 7, kind: output, shape index: {0}]
  %s8 = inlined_call_operand.hbm [shape: f32[2,1,2,128], index: 8, kind: output, shape index: {1}]
  %9 = xla_tuple %s7, %s8
  %s10 = sld [smem:[#allocation0]]
  $region97: #{tpu_custom_call.1} parent=0
    _
  %s12 = ssub.s32 1, %s10
  %s13 = scalar_select 0, %s12, %s10
  %14 = sst [smem:[#allocation3]] %s0
  $region1: #{tpu_custom_call.1} parent=0
    #allocation4 [shape = 'u8[16384]{0}', space=vmem, size = 0x4000, scoped, tag = 'input window, operand 1']
    #allocation5 [shape = 's32[2]{0}', space=sflag, size = 0x8, scoped, tag = 'scoped memory for tpu_custom_call.1']
    #allocation6 [shape = 's32[2]{0}', space=sflag, size = 0x8, scoped, tag = 'scoped memory for tpu_custom_call.1']
    #allocation7 [shape = 'u8[16384]{0}', space=vmem, size = 0x4000, scoped, tag = 'input window, operand 2']
    #allocation8 [shape = 's32[2]{0}', space=sflag, size = 0x8, scoped, tag = 'scoped memory for tpu_custom_call.1']
    #allocation9 [shape = 'u8[32768]{0}', space=vmem, size = 0x8000, scoped, tag = 'input window, operand 3, single buffered']
    #allocation10 [shape = 'u8[131072]{0}', space=vmem, size = 0x20000, scoped, tag = 'input window, operand 5, single buffered']
    #allocation11 [shape = 's32[1]{0}', space=sflag, size = 0x4, scoped, tag = 'scoped memory for tpu_custom_call.1']
    #allocation12 [shape = 'u8[16384]{0}', space=vmem, size = 0x4000, scoped, tag = 'output window, operand 0']
    #allocation13 [shape = 'u8[2048]{0}', space=vmem, size = 0x800, scoped, tag = 'output window, operand 1']
    #allocation14 [shape = 's32[2]{0}', space=sflag, size = 0x8, scoped, tag = 'scoped memory for tpu_custom_call.1']
    %15 = vsyncpa [#allocation5], 0
    %s16 = scalar_lea.sflag [#allocation5], 1
    %17 = vsyncpa %s16, 0
    %18 = vsyncpa [#allocation8], 0
    %s19 = scalar_lea.sflag [#allocation8], 1
    %20 = vsyncpa %s19, 0
    %21 = vsyncpa [#allocation11], 0
    %22 = vsyncpa [#allocation6], 0
    %s23 = scalar_lea.sflag [#allocation6], 1
    %24 = vsyncpa %s23, 0
    %25 = vsyncpa [#allocation14], 0
    %s26 = scalar_lea.sflag [#allocation14], 1
    %27 = vsyncpa %s26, 0
    loop: start=0, step=1, limit=4
    $region2: #{tpu_custom_call.1} parent=1 // loop_pre_header
      _
    $region3: #{tpu_custom_call.1} parent=1 // loop_header
      %s29 = sphi 0, %s33
      %p30 = scmp.ge.s32.totalorder %s29, 4
      %s36 = sphi 0, %s55
      %s37 = sphi 0, %s51
      %s38 = sphi 0, %s47
      %s39 = sphi 0, %s36
      %s40 = sphi 0, %s37
      %s41 = sphi 0, %s38
      %s42 = sphi 0, %s39
      %s43 = sphi 0, %s40
      %s44 = sphi 0, %s41
      %s56 = sphi 0, %s56
      %s58 = sphi 0, %s56
      %s59 = sphi 0, %s58
      %s73 = sphi 0, %s59
      %s83 = sphi 0, %s85
      %s86 = sphi 0, %s83
      %s87 = sphi 0, %s86
      %s103 = sphi 0, %s87
      %s111 = sphi 0, %s113
      %s114 = sphi 0, %s111
      %s115 = sphi 0, %s114
      %s131 = sphi 0, %s115
      %s135 = sphi 0, %s135
      %s137 = sphi 0, %s135
      %s138 = sphi 0, %s137
      %s152 = sphi 0, %s138
      %s156 = sphi 0, %s156
      %s158 = sphi 0, %s156
      %s159 = sphi 0, %s158
      %s173 = sphi 0, %s159
      %s177 = sphi 0, %s177
      %s179 = sphi 0, %s177
      %s180 = sphi 0, %s179
      %s194 = sphi 0, %s180
      %s198 = sphi 0, %s198
      %s200 = sphi 0, %s198
      %s201 = sphi 0, %s200
      %s215 = sphi 0, %s201
      %s223 = sphi 0, %s225
      %s226 = sphi 0, %s223
      %s227 = sphi 0, %s226
      %s243 = sphi 0, %s227
      %s251 = sphi 0, %s253
      %s254 = sphi 0, %s251
      %s255 = sphi 0, %s254
      %s271 = sphi 0, %s255
    $region4: #{tpu_custom_call.1} parent=1 // loop_header_branch
      %32 = sbr.rel (%p30) target = $region8
    $region5: #{tpu_custom_call.1} parent=1 // loop_body
      %s34 = ssub.s32 %s29, 1
      %s35 = ssub.s32 %s29, 2
      %s45 = sadd.s32 1, %s38
      %p46 = scmp.ge.s32.totalorder %s45, 1
      %s47 = scalar_select %p46, 0, %s45
      %s48 = sadd.s32 1, %s37
      %s49 = scalar_select %p46, %s48, %s37
      %p50 = scmp.ge.s32.totalorder %s49, 1
      %s51 = scalar_select %p50, 0, %s49
      %s52 = sadd.s32 1, %s36
      %s53 = scalar_select %p50, %s52, %s36
      %p54 = scmp.ge.s32.totalorder %s53, 2
      %s55 = scalar_select %p54, 0, %s53
      %s57 = sadd.s32 %s56, 1
      %p60 = scmp.eq.s32.totalorder %s29, 1
      %p61 = scmp.ne.s32.totalorder %s56, %s58
      %p62 = scmp.eq.s32.totalorder %s29, 0
      %p63 = por %p61, %p62
      %p64 = scmp.ne.s32.totalorder %s56, %s58
      %p65 = scmp.eq.s32.totalorder %s34, 1
      %p66 = por %p64, %p65
      %p67 = scmp.ne.s32.totalorder %s58, %s59
      %p68 = scmp.eq.s32.totalorder %s34, 0
      %p69 = por %p67, %p68
      %p70 = scmp.ne.s32.totalorder %s58, %s59
      %p71 = scmp.eq.s32.totalorder %s35, 1
      %p72 = por %p70, %p71
      %p74 = scmp.ne.s32.totalorder %s59, %s73
      %p75 = scmp.eq.s32.totalorder %s35, 0
      %p76 = por %p74, %p75
      %s77 = ssub.s32 %s36, %s55
      %s78 = ssub.s32 %s37, %s51
      %s79 = sor.u32 %s77, %s78
      %s80 = ssub.s32 %s38, %s47
      %s81 = sor.u32 %s79, %s80
      %p82 = scmp.eq.s32.totalorder %s81, 0
      %s84 = sadd.s32 %s83, 1
      %s85 = scalar_select %p82, %s83, %s84
      %p88 = pneg %p82
      %p89 = scmp.eq.s32.totalorder %s29, 1
      %p90 = por %p88, %p89
      %p91 = scmp.ne.s32.totalorder %s83, %s86
      %p92 = scmp.eq.s32.totalorder %s29, 0
      %p93 = por %p91, %p92
      %p94 = scmp.ne.s32.totalorder %s83, %s86
      %p95 = scmp.eq.s32.totalorder %s34, 1
      %p96 = por %p94, %p95
      %p97 = scmp.ne.s32.totalorder %s86, %s87
      %p98 = scmp.eq.s32.totalorder %s34, 0
      %p99 = por %p97, %p98
      %p100 = scmp.ne.s32.totalorder %s86, %s87
      %p101 = scmp.eq.s32.totalorder %s35, 1
      %p102 = por %p100, %p101
      %p104 = scmp.ne.s32.totalorder %s87, %s103
      %p105 = scmp.eq.s32.totalorder %s35, 0
      %p106 = por %p104, %p105
      %s107 = ssub.s32 %s36, %s55
      %s108 = ssub.s32 %s38, %s47
      %s109 = sor.u32 %s107, %s108
      %p110 = scmp.eq.s32.totalorder %s109, 0
      %s112 = sadd.s32 %s111, 1
      %s113 = scalar_select %p110, %s111, %s112
      %p116 = pneg %p110
      %p117 = scmp.eq.s32.totalorder %s29, 1
      %p118 = por %p116, %p117
      %p119 = scmp.ne.s32.totalorder %s111, %s114
      %p120 = scmp.eq.s32.totalorder %s29, 0
      %p121 = por %p119, %p120
      %p122 = scmp.ne.s32.totalorder %s111, %s114
      %p123 = scmp.eq.s32.totalorder %s34, 1
      %p124 = por %p122, %p123
      %p125 = scmp.ne.s32.totalorder %s114, %s115
      %p126 = scmp.eq.s32.totalorder %s34, 0
      %p127 = por %p125, %p126
      %p128 = scmp.ne.s32.totalorder %s114, %s115
      %p129 = scmp.eq.s32.totalorder %s35, 1
      %p130 = por %p128, %p129
      %p132 = scmp.ne.s32.totalorder %s115, %s131
      %p133 = scmp.eq.s32.totalorder %s35, 0
      %p134 = por %p132, %p133
      %s136 = sadd.s32 %s135, 1
      %p139 = scmp.eq.s32.totalorder %s29, 1
      %p140 = scmp.ne.s32.totalorder %s135, %s137
      %p141 = scmp.eq.s32.totalorder %s29, 0
      %p142 = por %p140, %p141
      %p143 = scmp.ne.s32.totalorder %s135, %s137
      %p144 = scmp.eq.s32.totalorder %s34, 1
      %p145 = por %p143, %p144
      %p146 = scmp.ne.s32.totalorder %s137, %s138
      %p147 = scmp.eq.s32.totalorder %s34, 0
      %p148 = por %p146, %p147
      %p149 = scmp.ne.s32.totalorder %s137, %s138
      %p150 = scmp.eq.s32.totalorder %s35, 1
      %p151 = por %p149, %p150
      %p153 = scmp.ne.s32.totalorder %s138, %s152
      %p154 = scmp.eq.s32.totalorder %s35, 0
      %p155 = por %p153, %p154
      %s157 = sadd.s32 %s156, 1
      %p160 = scmp.eq.s32.totalorder %s29, 1
      %p161 = scmp.ne.s32.totalorder %s156, %s158
      %p162 = scmp.eq.s32.totalorder %s29, 0
      %p163 = por %p161, %p162
      %p164 = scmp.ne.s32.totalorder %s156, %s158
      %p165 = scmp.eq.s32.totalorder %s34, 1
      %p166 = por %p164, %p165
      %p167 = scmp.ne.s32.totalorder %s158, %s159
      %p168 = scmp.eq.s32.totalorder %s34, 0
      %p169 = por %p167, %p168
      %p170 = scmp.ne.s32.totalorder %s158, %s159
      %p171 = scmp.eq.s32.totalorder %s35, 1
      %p172 = por %p170, %p171
      %p174 = scmp.ne.s32.totalorder %s159, %s173
      %p175 = scmp.eq.s32.totalorder %s35, 0
      %p176 = por %p174, %p175
      %s178 = sadd.s32 %s177, 1
      %p181 = scmp.eq.s32.totalorder %s29, 1
      %p182 = scmp.ne.s32.totalorder %s177, %s179
      %p183 = scmp.eq.s32.totalorder %s29, 0
      %p184 = por %p182, %p183
      %p185 = scmp.ne.s32.totalorder %s177, %s179
      %p186 = scmp.eq.s32.totalorder %s34, 1
      %p187 = por %p185, %p186
      %p188 = scmp.ne.s32.totalorder %s179, %s180
      %p189 = scmp.eq.s32.totalorder %s34, 0
      %p190 = por %p188, %p189
      %p191 = scmp.ne.s32.totalorder %s179, %s180
      %p192 = scmp.eq.s32.totalorder %s35, 1
      %p193 = por %p191, %p192
      %p195 = scmp.ne.s32.totalorder %s180, %s194
      %p196 = scmp.eq.s32.totalorder %s35, 0
      %p197 = por %p195, %p196
      %s199 = sadd.s32 %s198, 1
      %p202 = scmp.eq.s32.totalorder %s29, 1
      %p203 = scmp.ne.s32.totalorder %s198, %s200
      %p204 = scmp.eq.s32.totalorder %s29, 0
      %p205 = por %p203, %p204
      %p206 = scmp.ne.s32.totalorder %s198, %s200
      %p207 = scmp.eq.s32.totalorder %s34, 1
      %p208 = por %p206, %p207
      %p209 = scmp.ne.s32.totalorder %s200, %s201
      %p210 = scmp.eq.s32.totalorder %s34, 0
      %p211 = por %p209, %p210
      %p212 = scmp.ne.s32.totalorder %s200, %s201
      %p213 = scmp.eq.s32.totalorder %s35, 1
      %p214 = por %p212, %p213
      %p216 = scmp.ne.s32.totalorder %s201, %s215
      %p217 = scmp.eq.s32.totalorder %s35, 0
      %p218 = por %p216, %p217
      %s219 = ssub.s32 %s36, %s55
      %s220 = ssub.s32 %s37, %s51
      %s221 = sor.u32 %s219, %s220
      %p222 = scmp.eq.s32.totalorder %s221, 0
      %s224 = sadd.s32 %s223, 1
      %s225 = scalar_select %p222, %s223, %s224
      %p228 = pneg %p222
      %p229 = scmp.eq.s32.totalorder %s29, 1
      %p230 = por %p228, %p229
      %p231 = scmp.ne.s32.totalorder %s223, %s226
      %p232 = scmp.eq.s32.totalorder %s29, 0
      %p233 = por %p231, %p232
      %p234 = scmp.ne.s32.totalorder %s223, %s226
      %p235 = scmp.eq.s32.totalorder %s34, 1
      %p236 = por %p234, %p235
      %p237 = scmp.ne.s32.totalorder %s226, %s227
      %p238 = scmp.eq.s32.totalorder %s34, 0
      %p239 = por %p237, %p238
      %p240 = scmp.ne.s32.totalorder %s226, %s227
      %p241 = scmp.eq.s32.totalorder %s35, 1
      %p242 = por %p240, %p241
      %p244 = scmp.ne.s32.totalorder %s227, %s243
      %p245 = scmp.eq.s32.totalorder %s35, 0
      %p246 = por %p244, %p245
      %s247 = ssub.s32 %s36, %s55
      %s248 = ssub.s32 %s37, %s51
      %s249 = sor.u32 %s247, %s248
      %p250 = scmp.eq.s32.totalorder %s249, 0
      %s252 = sadd.s32 %s251, 1
      %s253 = scalar_select %p250, %s251, %s252
      %p256 = pneg %p250
      %p257 = scmp.eq.s32.totalorder %s29, 1
      %p258 = por %p256, %p257
      %p259 = scmp.ne.s32.totalorder %s251, %s254
      %p260 = scmp.eq.s32.totalorder %s29, 0
      %p261 = por %p259, %p260
      %p262 = scmp.ne.s32.totalorder %s251, %s254
      %p263 = scmp.eq.s32.totalorder %s34, 1
      %p264 = por %p262, %p263
      %p265 = scmp.ne.s32.totalorder %s254, %s255
      %p266 = scmp.eq.s32.totalorder %s34, 0
      %p267 = por %p265, %p266
      %p268 = scmp.ne.s32.totalorder %s254, %s255
      %p269 = scmp.eq.s32.totalorder %s35, 1
      %p270 = por %p268, %p269
      %p272 = scmp.ne.s32.totalorder %s255, %s271
      %p273 = scmp.eq.s32.totalorder %s35, 0
      %p274 = por %p272, %p273
      %p275 = scmp.le.s32.totalorder 1, %s29
      %p276 = scmp.lt.s32.totalorder %s29, 3
      %p277 = pnand %p275, %p276
      %p278 = pneg %p277
      // Predicated region
      $region9: #{tpu_custom_call.1} parent=5 // pred_check
        _
      $region10: #{tpu_custom_call.1} parent=5 // pred_check_branch
        %280 = sbr.rel (%p277) target = $region12
      $region11: #{tpu_custom_call.1} parent=5 // pred_region
        %s281 = ssub.s32 %s29, 1
        // Predicated region
        $region13: #{tpu_custom_call.1} parent=11 // pred_check
          %p282 = pneg %p69
        $region14: #{tpu_custom_call.1} parent=11 // pred_check_branch
          %284 = sbr.rel (%p282) target = $region16
        $region15: #{tpu_custom_call.1} parent=11 // pred_region
          _
        $region16: #{tpu_custom_call.1} parent=11 // pred_fallthru
          _
        // Predicated region
        $region17: #{tpu_custom_call.1} parent=11 // pred_check
          %p285 = pneg %p148
        $region18: #{tpu_custom_call.1} parent=11 // pred_check_branch
          %287 = sbr.rel (%p285) target = $region20
        $region19: #{tpu_custom_call.1} parent=11 // pred_region
          %s289 = ssub.s32 1024, 1024
          %290 = vsyncadd [#allocation8], %s289
          %s291 = sshll.u32 [#allocation9], 4
          %s292 = int_to_ptr.vmem [resolvable:$true] %s291
          %297 = dma.hbm_to_vmem [thread:$0]  %s3, 1024, %s292, [#allocation8], 256, 256, 16
        $region20: #{tpu_custom_call.1} parent=11 // pred_fallthru
          _
        // Predicated region
        $region21: #{tpu_custom_call.1} parent=11 // pred_check
          %p298 = pneg %p169
        $region22: #{tpu_custom_call.1} parent=11 // pred_check_branch
          %300 = sbr.rel (%p298) target = $region24
        $region23: #{tpu_custom_call.1} parent=11 // pred_region
          _
        $region24: #{tpu_custom_call.1} parent=11 // pred_fallthru
          _
        // Predicated region
        $region25: #{tpu_custom_call.1} parent=11 // pred_check
          %p301 = pneg %p190
        $region26: #{tpu_custom_call.1} parent=11 // pred_check_branch
          %303 = sbr.rel (%p301) target = $region28
        $region27: #{tpu_custom_call.1} parent=11 // pred_region
          %s305 = ssub.s32 4096, 4096
          %306 = vsyncadd [#allocation11], %s305
          %s307 = sshll.u32 [#allocation10], 4
          %s308 = int_to_ptr.vmem [resolvable:$true] %s307
          %313 = dma.hbm_to_vmem [thread:$0]  %s5, 4096, %s308, [#allocation11], 64, 64, 4
        $region28: #{tpu_custom_call.1} parent=11 // pred_fallthru
          _
        // Predicated region
        $region29: #{tpu_custom_call.1} parent=11 // pred_check
          %p314 = pneg %p211
        $region30: #{tpu_custom_call.1} parent=11 // pred_check_branch
          %316 = sbr.rel (%p314) target = $region32
        $region31: #{tpu_custom_call.1} parent=11 // pred_region
          _
        $region32: #{tpu_custom_call.1} parent=11 // pred_fallthru
          _
      $region12: #{tpu_custom_call.1} parent=5 // pred_fallthru
        _
      %p317 = scmp.lt.s32.totalorder %s29, 2
      // Predicated region
      $region33: #{tpu_custom_call.1} parent=5 // pred_check
        %p318 = pneg %p317
      $region34: #{tpu_custom_call.1} parent=5 // pred_check_branch
        %320 = sbr.rel (%p318) target = $region36
      $region35: #{tpu_custom_call.1} parent=5 // pred_region
        // Predicated region
        $region37: #{tpu_custom_call.1} parent=35 // pred_check
          %p321 = pneg %p93
        $region38: #{tpu_custom_call.1} parent=35 // pred_check_branch
          %323 = sbr.rel (%p321) target = $region40
        $region39: #{tpu_custom_call.1} parent=35 // pred_region
          %s324 = sand.u32 %s83, 1
          %s325 = scalar_lea.sflag [#allocation5], %s324
          %s326 = sand.u32 %s83, 1
          %s327 = smul.addr %s326, 16
          %s328 = scalar_lea.vmem [#allocation4], %s327
          %s329 = smul.u32 2, %s37
          %s331 = ssub.s32 256, 256
          %332 = vsyncadd %s325, %s331
          %s333 = sadd.s32 %s38, %s329
          %s334 = smul.addr %s36, 2
          %s335 = sadd.s32 %s333, %s334
          %s336 = smul.addr %s335, 128
          %s337 = scalar_lea.hbm %s1, %s336
          %s338 = sshll.u32 %s328, 4
          %s339 = int_to_ptr.vmem [resolvable:$true] %s338
          %344 = dma.hbm_to_vmem [thread:$0]  %s337, 256, %s339, %s325, 128, 128, 8
        $region40: #{tpu_custom_call.1} parent=35 // pred_fallthru
          _
        // Predicated region
        $region41: #{tpu_custom_call.1} parent=35 // pred_check
          %p345 = pneg %p121
        $region42: #{tpu_custom_call.1} parent=35 // pred_check_branch
          %347 = sbr.rel (%p345) target = $region44
        $region43: #{tpu_custom_call.1} parent=35 // pred_region
          %s348 = sand.u32 %s29, 1
          %s349 = scalar_lea.sflag [#allocation8], %s348
          %s350 = sand.u32 %s111, 1
          %s351 = smul.addr %s350, 16
          %s352 = scalar_lea.vmem [#allocation7], %s351
          %s353 = smul.u32 2, %s38
          %s355 = ssub.s32 256, 256
          %356 = vsyncadd %s349, %s355
          %s357 = smul.addr %s36, 2
          %s358 = sadd.s32 %s353, %s357
          %s359 = smul.addr %s358, 128
          %s360 = scalar_lea.hbm %s2, %s359
          %s361 = sshll.u32 %s352, 4
          %s362 = int_to_ptr.vmem [resolvable:$true] %s361
          %367 = dma.hbm_to_vmem [thread:$0]  %s360, 256, %s362, %s349, 128, 128, 8
        $region44: #{tpu_custom_call.1} parent=35 // pred_fallthru
          _
      $region36: #{tpu_custom_call.1} parent=5 // pred_fallthru
        _
      %p368 = scmp.le.s32.totalorder 1, %s29
      %p369 = scmp.lt.s32.totalorder %s29, 3
      %p370 = pnand %p368, %p369
      %p371 = pneg %p370
      // Predicated region
      $region45: #{tpu_custom_call.1} parent=5 // pred_check
        _
      $region46: #{tpu_custom_call.1} parent=5 // pred_check_branch
        %373 = sbr.rel (%p370) target = $region48
      $region47: #{tpu_custom_call.1} parent=5 // pred_region
        %s374 = ssub.s32 %s29, 1
        %s375 = sand.u32 %s86, 1
        %s376 = scalar_lea.sflag [#allocation5], %s375
        %s377 = sand.u32 %s86, 1
        %s378 = smul.addr %s377, 16
        %s379 = scalar_lea.vmem [#allocation4], %s378
        // Predicated region
        $region49: #{tpu_custom_call.1} parent=47 // pred_check
          %p380 = pneg %p99
        $region50: #{tpu_custom_call.1} parent=47 // pred_check_branch
          %382 = sbr.rel (%p380) target = $region52
        $region51: #{tpu_custom_call.1} parent=47 // pred_region
          %383 = dma.done %s376, 256
        $region52: #{tpu_custom_call.1} parent=47 // pred_fallthru
          _
        %s384 = sand.u32 %s34, 1
        %s385 = scalar_lea.sflag [#allocation8], %s384
        %s386 = sand.u32 %s114, 1
        %s387 = smul.addr %s386, 16
        %s388 = scalar_lea.vmem [#allocation7], %s387
        // Predicated region
        $region53: #{tpu_custom_call.1} parent=47 // pred_check
          %p389 = pneg %p127
        $region54: #{tpu_custom_call.1} parent=47 // pred_check_branch
          %391 = sbr.rel (%p389) target = $region56
        $region55: #{tpu_custom_call.1} parent=47 // pred_region
          %392 = dma.done %s385, 256
        $region56: #{tpu_custom_call.1} parent=47 // pred_fallthru
          _
        // Predicated region
        $region57: #{tpu_custom_call.1} parent=47 // pred_check
          %p393 = pneg %p148
        $region58: #{tpu_custom_call.1} parent=47 // pred_check_branch
          %395 = sbr.rel (%p393) target = $region60
        $region59: #{tpu_custom_call.1} parent=47 // pred_region
          %396 = dma.done [#allocation8], 1024
        $region60: #{tpu_custom_call.1} parent=47 // pred_fallthru
          _
        // Predicated region
        $region61: #{tpu_custom_call.1} parent=47 // pred_check
          %p397 = pneg %p190
        $region62: #{tpu_custom_call.1} parent=47 // pred_check_branch
          %399 = sbr.rel (%p397) target = $region64
        $region63: #{tpu_custom_call.1} parent=47 // pred_region
          %400 = dma.done [#allocation11], 4096
        $region64: #{tpu_custom_call.1} parent=47 // pred_fallthru
          _
        %p401 = pneg %p69
        %p402 = pneg %p66
        %s403 = sand.u32 %s86, 1
        %s404 = scalar_lea.sflag [#allocation5], %s403
        %s405 = sand.u32 %s86, 1
        %s406 = smul.addr %s405, 16
        %s407 = scalar_lea.vmem [#allocation4], %s406
        %p408 = pneg %p99
        %p409 = pneg %p96
        %s410 = sand.u32 %s34, 1
        %s411 = scalar_lea.sflag [#allocation8], %s410
        %s412 = sand.u32 %s114, 1
        %s413 = smul.addr %s412, 16
        %s414 = scalar_lea.vmem [#allocation7], %s413
        %p415 = pneg %p127
        %p416 = pneg %p124
        %p417 = pneg %p148
        %p418 = pneg %p145
        %p419 = pneg %p169
        %p420 = pneg %p166
        %p421 = pneg %p190
        %p422 = pneg %p187
        %p423 = pneg %p211
        %p424 = pneg %p208
        %p425 = pneg %p239
        %p426 = pneg %p236
        %s427 = sand.u32 %s226, 1
        %s428 = scalar_lea.sflag [#allocation6], %s427
        %s429 = sand.u32 %s226, 1
        %s430 = smul.addr %s429, 16
        %s431 = scalar_lea.vmem [#allocation12], %s430
        %p432 = pneg %p267
        %p433 = pneg %p264
        %s434 = sand.u32 %s254, 1
        %s435 = scalar_lea.sflag [#allocation14], %s434
        %s436 = sand.u32 %s254, 1
        %s437 = smul.addr %s436, 2
        %s438 = scalar_lea.vmem [#allocation13], %s437
        %s439 = smul.u32 2, %s40
        %s440 = smul.u32 2, %s41
        %s441 = smul.u32 2, %s40
        %v443 = vld [vmem:[%s388] sm:$0xff]
        %v444 = vld [vmem:[%s388 + $0x8] sm:$0xff]
        %v445 = vpack.c.bf16 %v444, %v443
        %v446 = vld [vmem:[#allocation9] sm:$0xff]
        %v447 = vld [vmem:[#allocation9 + $0x8] sm:$0xff]
        %v448 = vld [vmem:[#allocation9 + $0x10] sm:$0xff]
        %v449 = vld [vmem:[#allocation9 + $0x18] sm:$0xff]
        %v450 = vld [vmem:[#allocation9 + $0x20] sm:$0xff]
        %v451 = vld [vmem:[#allocation9 + $0x28] sm:$0xff]
        %v452 = vld [vmem:[#allocation9 + $0x30] sm:$0xff]
        %v453 = vld [vmem:[#allocation9 + $0x38] sm:$0xff]
        %v462 = vunpack.c.l.b16 %v446
        %v463 = vunpack.c.h.b16 %v446
        %v464 = vunpack.c.l.b16 %v447
        %v465 = vunpack.c.h.b16 %v447
        %v466 = vunpack.c.l.b16 %v448
        %v467 = vunpack.c.h.b16 %v448
        %v468 = vunpack.c.l.b16 %v449
        %v469 = vunpack.c.h.b16 %v449
        %v470 = vunpack.c.l.b16 %v450
        %v471 = vunpack.c.h.b16 %v450
        %v472 = vunpack.c.l.b16 %v451
        %v473 = vunpack.c.h.b16 %v451
        %v474 = vunpack.c.l.b16 %v452
        %v475 = vunpack.c.h.b16 %v452
        %v476 = vunpack.c.l.b16 %v453
        %v477 = vunpack.c.h.b16 %v453
        %v478 = vpack.c.b16 %v466, %v462
        %v479 = vpack.c.b16 %v467, %v463
        %v480 = vpack.c.b16 %v468, %v464
        %v481 = vpack.c.b16 %v469, %v465
        %v482 = vpack.c.b16 %v474, %v470
        %v483 = vpack.c.b16 %v475, %v471
        %v484 = vpack.c.b16 %v476, %v472
        %v485 = vpack.c.b16 %v477, %v473
        %vm494 = vcmask 261120
        %v496 = vsel %vm494, %v445, 0
        %498 = vmatprep.subr.bf16.mxu0 %v479
        %499 = vmatpush1.bf16.msra.mxu0 %v478
        %500 = vmatprep.subr.bf16.mxu0 %v483
        %501 = vmatpush1.bf16.msra.mxu0 %v482
        %502 = vmatprep.subr.bf16.mxu0 0
        %503 = vmatpush1.bf16.msra.mxu0 0
        %504 = vmatprep.subr.bf16.mxu0 0
        %505 = vmatpush1.bf16.msra.mxu0 0
        %506 = vmatprep.subr.bf16.mxu0 0
        %507 = vmatpush1.bf16.msra.mxu0 0
        %508 = vmatprep.subr.bf16.mxu0 0
        %509 = vmatpush1.bf16.msra.mxu0 0
        %510 = vmatprep.subr.bf16.mxu0 0
        %511 = vmatpush1.bf16.msra.mxu0 0
        %512 = vmatprep.subr.bf16.mxu0 0
        %513 = vmatpush1.bf16.msra.mxu0 0
        %514 = vmatprep.subr.bf16.mxu0 0
        %515 = vmatpush1.bf16.msra.mxu0 0
        %516 = vmatprep.subr.bf16.mxu0 0
        %517 = vmatpush1.bf16.msra.mxu0 0
        %518 = vmatprep.subr.bf16.mxu0 0
        %519 = vmatpush1.bf16.msra.mxu0 0
        %520 = vmatprep.subr.bf16.mxu0 0
        %521 = vmatpush1.bf16.msra.mxu0 0
        %522 = vmatprep.subr.bf16.mxu0 0
        %523 = vmatpush1.bf16.msra.mxu0 0
        %524 = vmatprep.subr.bf16.mxu0 0
        %525 = vmatpush1.bf16.msra.mxu0 0
        %526 = vmatprep.subr.bf16.mxu0 0
        %527 = vmatpush1.bf16.msra.mxu0 0
        %528 = vmatprep.subr.bf16.mxu0 0
        %529 = vmatpush1.bf16.msra.mxu0 0
        %530 = vmatprep.mubr.bf16.mxu0 0
        %531 = vmatmul.mubr.bf16.gmra.mrb[0].mxu0 %v496
        %v532 = vpop.f32.mrb[0].mxu0
        %v533 = vadd.f32 0.0, %v532
        %v534 = vpop.f32.mrb[0].mxu0
        %v535 = vadd.f32 0.0, %v534
        %v536 = vpop.f32.mrb[0].mxu0
        %v537 = vadd.f32 0.0, %v536
        %v538 = vpop.f32.mrb[0].mxu0
        %v539 = vadd.f32 0.0, %v538
        %540 = vdwg.mxu0
        %541 = vmatprep.subr.bf16.mxu0 %v481
        %542 = vmatpush1.bf16.msra.mxu0 %v480
        %543 = vmatprep.subr.bf16.mxu0 %v485
        %544 = vmatpush1.bf16.msra.mxu0 %v484
        %545 = vmatprep.subr.bf16.mxu0 0
        %546 = vmatpush1.bf16.msra.mxu0 0
        %547 = vmatprep.subr.bf16.mxu0 0
        %548 = vmatpush1.bf16.msra.mxu0 0
        %549 = vmatprep.subr.bf16.mxu0 0
        %550 = vmatpush1.bf16.msra.mxu0 0
        %551 = vmatprep.subr.bf16.mxu0 0
        %552 = vmatpush1.bf16.msra.mxu0 0
        %553 = vmatprep.subr.bf16.mxu0 0
        %554 = vmatpush1.bf16.msra.mxu0 0
        %555 = vmatprep.subr.bf16.mxu0 0
        %556 = vmatpush1.bf16.msra.mxu0 0
        %557 = vmatprep.subr.bf16.mxu0 0
        %558 = vmatpush1.bf16.msra.mxu0 0
        %559 = vmatprep.subr.bf16.mxu0 0
        %560 = vmatpush1.bf16.msra.mxu0 0
        %561 = vmatprep.subr.bf16.mxu0 0
        %562 = vmatpush1.bf16.msra.mxu0 0
        %563 = vmatprep.subr.bf16.mxu0 0
        %564 = vmatpush1.bf16.msra.mxu0 0
        %565 = vmatprep.subr.bf16.mxu0 0
        %566 = vmatpush1.bf16.msra.mxu0 0
        %567 = vmatprep.subr.bf16.mxu0 0
        %568 = vmatpush1.bf16.msra.mxu0 0
        %569 = vmatprep.subr.bf16.mxu0 0
        %570 = vmatpush1.bf16.msra.mxu0 0
        %571 = vmatprep.subr.bf16.mxu0 0
        %572 = vmatpush1.bf16.msra.mxu0 0
        %573 = vmatprep.mubr.bf16.mxu0 0
        %574 = vmatmul.mubr.bf16.gmra.mrb[0].mxu0 %v496
        %v575 = vpop.f32.mrb[0].mxu0
        %v576 = vadd.f32 0.0, %v575
        %v577 = vpop.f32.mrb[0].mxu0
        %v578 = vadd.f32 0.0, %v577
        %v579 = vpop.f32.mrb[0].mxu0
        %v580 = vadd.f32 0.0, %v579
        %v581 = vpop.f32.mrb[0].mxu0
        %v582 = vadd.f32 0.0, %v581
        %583 = vdwg.mxu0
        %v584 = vpack.c.bf16 %v537, %v533
        %v585 = vpack.c.bf16 %v539, %v535
        %v586 = vpack.c.bf16 %v580, %v576
        %v587 = vpack.c.bf16 %v582, %v578
        %v588 = vld [vmem:[%s379] sm:$0xff]
        %v589 = vld [vmem:[%s379 + $0x8] sm:$0xff]
        %v590 = vpack.c.bf16 %v589, %v588
        %vm591 = vcmask 130048
        %v593 = vsel %vm591, %v590, 0
        %595 = vmatprep.subr.bf16.mxu0 %v585
        %596 = vmatpush1.bf16.msra.mxu0 %v584
        %597 = vmatprep.subr.bf16.mxu0 0
        %598 = vmatpush1.bf16.msra.mxu0 0
        %599 = vmatprep.subr.bf16.mxu0 0
        %600 = vmatpush1.bf16.msra.mxu0 0
        %601 = vmatprep.subr.bf16.mxu0 0
        %602 = vmatpush1.bf16.msra.mxu0 0
        %603 = vmatprep.subr.bf16.mxu0 0
        %604 = vmatpush1.bf16.msra.mxu0 0
        %605 = vmatprep.subr.bf16.mxu0 0
        %606 = vmatpush1.bf16.msra.mxu0 0
        %607 = vmatprep.subr.bf16.mxu0 0
        %608 = vmatpush1.bf16.msra.mxu0 0
        %609 = vmatprep.subr.bf16.mxu0 0
        %610 = vmatpush1.bf16.msra.mxu0 0
        %611 = vmatprep.subr.bf16.mxu0 0
        %612 = vmatpush1.bf16.msra.mxu0 0
        %613 = vmatprep.subr.bf16.mxu0 0
        %614 = vmatpush1.bf16.msra.mxu0 0
        %615 = vmatprep.subr.bf16.mxu0 0
        %616 = vmatpush1.bf16.msra.mxu0 0
        %617 = vmatprep.subr.bf16.mxu0 0
        %618 = vmatpush1.bf16.msra.mxu0 0
        %619 = vmatprep.subr.bf16.mxu0 0
        %620 = vmatpush1.bf16.msra.mxu0 0
        %621 = vmatprep.subr.bf16.mxu0 0
        %622 = vmatpush1.bf16.msra.mxu0 0
        %623 = vmatprep.subr.bf16.mxu0 0
        %624 = vmatpush1.bf16.msra.mxu0 0
        %625 = vmatprep.subr.bf16.mxu0 0
        %626 = vmatpush1.bf16.msra.mxu0 0
        %627 = vmatprep.mubr.bf16.mxu0 0
        %628 = vmatmul.mubr.bf16.gmra.mrb[0].mxu0 %v593
        %v629 = vpop.f32.mrb[0].mxu0
        %v630 = vadd.f32 0.0, %v629
        %v631 = vpop.f32.mrb[0].mxu0
        %v632 = vadd.f32 0.0, %v631
        %v633 = vpop.f32.mrb[0].mxu0
        %v634 = vadd.f32 0.0, %v633
        %v635 = vpop.f32.mrb[0].mxu0
        %v636 = vadd.f32 0.0, %v635
        %637 = vdwg.mxu0
        %638 = vmatprep.subr.bf16.mxu0 %v587
        %639 = vmatpush1.bf16.msra.mxu0 %v586
        %640 = vmatprep.subr.bf16.mxu0 0
        %641 = vmatpush1.bf16.msra.mxu0 0
        %642 = vmatprep.subr.bf16.mxu0 0
        %643 = vmatpush1.bf16.msra.mxu0 0
        %644 = vmatprep.subr.bf16.mxu0 0
        %645 = vmatpush1.bf16.msra.mxu0 0
        %646 = vmatprep.subr.bf16.mxu0 0
        %647 = vmatpush1.bf16.msra.mxu0 0
        %648 = vmatprep.subr.bf16.mxu0 0
        %649 = vmatpush1.bf16.msra.mxu0 0
        %650 = vmatprep.subr.bf16.mxu0 0
        %651 = vmatpush1.bf16.msra.mxu0 0
        %652 = vmatprep.subr.bf16.mxu0 0
        %653 = vmatpush1.bf16.msra.mxu0 0
        %654 = vmatprep.subr.bf16.mxu0 0
        %655 = vmatpush1.bf16.msra.mxu0 0
        %656 = vmatprep.subr.bf16.mxu0 0
        %657 = vmatpush1.bf16.msra.mxu0 0
        %658 = vmatprep.subr.bf16.mxu0 0
        %659 = vmatpush1.bf16.msra.mxu0 0
        %660 = vmatprep.subr.bf16.mxu0 0
        %661 = vmatpush1.bf16.msra.mxu0 0
        %662 = vmatprep.subr.bf16.mxu0 0
        %663 = vmatpush1.bf16.msra.mxu0 0
        %664 = vmatprep.subr.bf16.mxu0 0
        %665 = vmatpush1.bf16.msra.mxu0 0
        %666 = vmatprep.subr.bf16.mxu0 0
        %667 = vmatpush1.bf16.msra.mxu0 0
        %668 = vmatprep.subr.bf16.mxu0 0
        %669 = vmatpush1.bf16.msra.mxu0 0
        %670 = vmatprep.mubr.bf16.mxu0 0
        %671 = vmatmul.mubr.bf16.gmra.mrb[0].mxu0 %v593
        %v672 = vpop.f32.mrb[0].mxu0
        %v673 = vadd.f32 0.0, %v672
        %v674 = vpop.f32.mrb[0].mxu0
        %v675 = vadd.f32 0.0, %v674
        %v676 = vpop.f32.mrb[0].mxu0
        %v677 = vadd.f32 0.0, %v676
        %v678 = vpop.f32.mrb[0].mxu0
        %v679 = vadd.f32 0.0, %v678
        %680 = vdwg.mxu0
        %s681 = sld [smem:[#allocation3]]
        %p682 = scmp.eq.s32.totalorder %s41, 0
        // Predicated region
        $region65: #{tpu_custom_call.1} parent=47 // pred_check
          %p683 = pneg %p682
        $region66: #{tpu_custom_call.1} parent=47 // pred_check_branch
          %685 = sbr.rel (%p683) target = $region68
        $region67: #{tpu_custom_call.1} parent=47 // pred_region
          %686 = vst [vmem:[#allocation2] sm:$0xff] %v630
          %687 = vst [vmem:[#allocation2 + $0x8] sm:$0xff] %v632
          %688 = vst [vmem:[#allocation2 + $0x10] sm:$0xff] %v673
          %689 = vst [vmem:[#allocation2 + $0x18] sm:$0xff] %v675
          %690 = vst [vmem:[#allocation2 + $0x20] sm:$0xff] %v634
          %691 = vst [vmem:[#allocation2 + $0x28] sm:$0xff] %v636
          %692 = vst [vmem:[#allocation2 + $0x30] sm:$0xff] %v677
          %693 = vst [vmem:[#allocation2 + $0x38] sm:$0xff] %v679
        $region68: #{tpu_custom_call.1} parent=47 // pred_fallthru
          _
        %p694 = scmp.gt.s32.totalorder %s41, 0
        // Predicated region
        $region69: #{tpu_custom_call.1} parent=47 // pred_check
          %p695 = pneg %p694
        $region70: #{tpu_custom_call.1} parent=47 // pred_check_branch
          %697 = sbr.rel (%p695) target = $region72
        $region71: #{tpu_custom_call.1} parent=47 // pred_region
          %v698 = vld [vmem:[#allocation2] sm:$0xff]
          %v699 = vld [vmem:[#allocation2 + $0x8] sm:$0xff]
          %v700 = vld [vmem:[#allocation2 + $0x10] sm:$0xff]
          %v701 = vld [vmem:[#allocation2 + $0x18] sm:$0xff]
          %v702 = vld [vmem:[#allocation2 + $0x20] sm:$0xff]
          %v703 = vld [vmem:[#allocation2 + $0x28] sm:$0xff]
          %v704 = vld [vmem:[#allocation2 + $0x30] sm:$0xff]
          %v705 = vld [vmem:[#allocation2 + $0x38] sm:$0xff]
          %v706 = vadd.f32 %v698, %v630
          %v707 = vadd.f32 %v699, %v632
          %v708 = vadd.f32 %v700, %v673
          %v709 = vadd.f32 %v701, %v675
          %v710 = vadd.f32 %v702, %v634
          %v711 = vadd.f32 %v703, %v636
          %v712 = vadd.f32 %v704, %v677
          %v713 = vadd.f32 %v705, %v679
          %714 = vst [vmem:[#allocation2] sm:$0xff] %v706
          %715 = vst [vmem:[#allocation2 + $0x8] sm:$0xff] %v707
          %716 = vst [vmem:[#allocation2 + $0x10] sm:$0xff] %v708
          %717 = vst [vmem:[#allocation2 + $0x18] sm:$0xff] %v709
          %718 = vst [vmem:[#allocation2 + $0x20] sm:$0xff] %v710
          %719 = vst [vmem:[#allocation2 + $0x28] sm:$0xff] %v711
          %720 = vst [vmem:[#allocation2 + $0x30] sm:$0xff] %v712
          %721 = vst [vmem:[#allocation2 + $0x38] sm:$0xff] %v713
        $region72: #{tpu_custom_call.1} parent=47 // pred_fallthru
          _
        // Predicated region
        $region73: #{tpu_custom_call.1} parent=47 // pred_check
          %p722 = pneg %p682
        $region74: #{tpu_custom_call.1} parent=47 // pred_check_branch
          %724 = sbr.rel (%p722) target = $region76
        $region75: #{tpu_custom_call.1} parent=47 // pred_region
          %v725 = vld [vmem:[#allocation2] sm:$0xff]
          %v726 = vld [vmem:[#allocation2 + $0x8] sm:$0xff]
          %v727 = vld [vmem:[#allocation2 + $0x10] sm:$0xff]
          %v728 = vld [vmem:[#allocation2 + $0x18] sm:$0xff]
          %v729 = vld [vmem:[#allocation2 + $0x20] sm:$0xff]
          %v730 = vld [vmem:[#allocation2 + $0x28] sm:$0xff]
          %v731 = vld [vmem:[#allocation2 + $0x30] sm:$0xff]
          %v732 = vld [vmem:[#allocation2 + $0x38] sm:$0xff]
          %v733 = vld [vmem:[%s4] sm:$0xf]
          %v735 = vlaneseq
          %v736 = vshrl.u32 %v735, 7
          %v737 = vsub.s32 0, %v736
          %v738 = vrot.slane %v733, %v737
          %v739 = vlaneseq
          %v740 = vshrl.u32 %v739, 7
          %v741 = vsub.s32 1, %v740
          %v742 = vrot.slane %v733, %v741
          %v743 = vlaneseq
          %v744 = vshrl.u32 %v743, 7
          %v745 = vsub.s32 2, %v744
          %v746 = vrot.slane %v733, %v745
          %v747 = vlaneseq
          %v748 = vshrl.u32 %v747, 7
          %v749 = vsub.s32 3, %v748
          %v750 = vrot.slane %v733, %v749
          %v755 = vadd.f32 %v725, %v738
          %v756 = vadd.f32 %v726, %v742
          %v757 = vadd.f32 %v727, %v746
          %v758 = vadd.f32 %v728, %v750
          %v759 = vadd.f32 %v729, %v738
          %v760 = vadd.f32 %v730, %v742
          %v761 = vadd.f32 %v731, %v746
          %v762 = vadd.f32 %v732, %v750
          %vm763 = vcmp.gt.f32.partialorder %v755, 0.0
          %vm764 = vcmp.gt.f32.partialorder %v756, 0.0
          %vm765 = vcmp.gt.f32.partialorder %v757, 0.0
          %vm766 = vcmp.gt.f32.partialorder %v758, 0.0
          %vm767 = vcmp.gt.f32.partialorder %v759, 0.0
          %vm768 = vcmp.gt.f32.partialorder %v760, 0.0
          %vm769 = vcmp.gt.f32.partialorder %v761, 0.0
          %vm770 = vcmp.gt.f32.partialorder %v762, 0.0
          %v771 = vstv %s681
          %v772 = vmul.f32 %v771, %v755
          %v773 = vmul.f32 %v771, %v756
          %v774 = vmul.f32 %v771, %v757
          %v775 = vmul.f32 %v771, %v758
          %v776 = vmul.f32 %v771, %v759
          %v777 = vmul.f32 %v771, %v760
          %v778 = vmul.f32 %v771, %v761
          %v779 = vmul.f32 %v771, %v762
          %v780 = vsel %vm763, %v755, %v772
          %v781 = vsel %vm764, %v756, %v773
          %v782 = vsel %vm765, %v757, %v774
          %v783 = vsel %vm766, %v758, %v775
          %v784 = vsel %vm767, %v759, %v776
          %v785 = vsel %vm768, %v760, %v777
          %v786 = vsel %vm769, %v761, %v778
          %v787 = vsel %vm770, %v762, %v779
          %v788 = vpack.c.bf16 %v784, %v780
          %v789 = vpack.c.bf16 %v785, %v781
          %v790 = vpack.c.bf16 %v786, %v782
          %v791 = vpack.c.bf16 %v787, %v783
          %v792 = vld [vmem:[#allocation10] sm:$0xf]
          %v793 = vld [vmem:[#allocation10 + $0x4] sm:$0xf]
          %v794 = vld [vmem:[#allocation10 + $0x8] sm:$0xf]
          %v795 = vld [vmem:[#allocation10 + $0xc] sm:$0xf]
          %v796 = vld [vmem:[#allocation10 + $0x10] sm:$0xf]
          %v797 = vld [vmem:[#allocation10 + $0x14] sm:$0xf]
          %v798 = vld [vmem:[#allocation10 + $0x18] sm:$0xf]
          %v799 = vld [vmem:[#allocation10 + $0x1c] sm:$0xf]
          %v800 = vld [vmem:[#allocation10 + $0x20] sm:$0xf]
          %v801 = vld [vmem:[#allocation10 + $0x24] sm:$0xf]
          %v802 = vld [vmem:[#allocation10 + $0x28] sm:$0xf]
          %v803 = vld [vmem:[#allocation10 + $0x2c] sm:$0xf]
          %v804 = vld [vmem:[#allocation10 + $0x30] sm:$0xf]
          %v805 = vld [vmem:[#allocation10 + $0x34] sm:$0xf]
          %v806 = vld [vmem:[#allocation10 + $0x38] sm:$0xf]
          %v807 = vld [vmem:[#allocation10 + $0x3c] sm:$0xf]
          %v808 = vld [vmem:[#allocation10 + $0x40] sm:$0xf]
          %v809 = vld [vmem:[#allocation10 + $0x44] sm:$0xf]
          %v810 = vld [vmem:[#allocation10 + $0x48] sm:$0xf]
          %v811 = vld [vmem:[#allocation10 + $0x4c] sm:$0xf]
          %v812 = vld [vmem:[#allocation10 + $0x50] sm:$0xf]
          %v813 = vld [vmem:[#allocation10 + $0x54] sm:$0xf]
          %v814 = vld [vmem:[#allocation10 + $0x58] sm:$0xf]
          %v815 = vld [vmem:[#allocation10 + $0x5c] sm:$0xf]
          %v816 = vld [vmem:[#allocation10 + $0x60] sm:$0xf]
          %v817 = vld [vmem:[#allocation10 + $0x64] sm:$0xf]
          %v818 = vld [vmem:[#allocation10 + $0x68] sm:$0xf]
          %v819 = vld [vmem:[#allocation10 + $0x6c] sm:$0xf]
          %v820 = vld [vmem:[#allocation10 + $0x70] sm:$0xf]
          %v821 = vld [vmem:[#allocation10 + $0x74] sm:$0xf]
          %v822 = vld [vmem:[#allocation10 + $0x78] sm:$0xf]
          %v823 = vld [vmem:[#allocation10 + $0x7c] sm:$0xf]
          %v824 = vld [vmem:[#allocation10 + $0x80] sm:$0xf]
          %v825 = vld [vmem:[#allocation10 + $0x84] sm:$0xf]
          %v826 = vld [vmem:[#allocation10 + $0x88] sm:$0xf]
          %v827 = vld [vmem:[#allocation10 + $0x8c] sm:$0xf]
          %v828 = vld [vmem:[#allocation10 + $0x90] sm:$0xf]
          %v829 = vld [vmem:[#allocation10 + $0x94] sm:$0xf]
          %v830 = vld [vmem:[#allocation10 + $0x98] sm:$0xf]
          %v831 = vld [vmem:[#allocation10 + $0x9c] sm:$0xf]
          %v832 = vld [vmem:[#allocation10 + $0xa0] sm:$0xf]
          %v833 = vld [vmem:[#allocation10 + $0xa4] sm:$0xf]
          %v834 = vld [vmem:[#allocation10 + $0xa8] sm:$0xf]
          %v835 = vld [vmem:[#allocation10 + $0xac] sm:$0xf]
          %v836 = vld [vmem:[#allocation10 + $0xb0] sm:$0xf]
          %v837 = vld [vmem:[#allocation10 + $0xb4] sm:$0xf]
          %v838 = vld [vmem:[#allocation10 + $0xb8] sm:$0xf]
          %v839 = vld [vmem:[#allocation10 + $0xbc] sm:$0xf]
          %v840 = vld [vmem:[#allocation10 + $0xc0] sm:$0xf]
          %v841 = vld [vmem:[#allocation10 + $0xc4] sm:$0xf]
          %v842 = vld [vmem:[#allocation10 + $0xc8] sm:$0xf]
          %v843 = vld [vmem:[#allocation10 + $0xcc] sm:$0xf]
          %v844 = vld [vmem:[#allocation10 + $0xd0] sm:$0xf]
          %v845 = vld [vmem:[#allocation10 + $0xd4] sm:$0xf]
          %v846 = vld [vmem:[#allocation10 + $0xd8] sm:$0xf]
          %v847 = vld [vmem:[#allocation10 + $0xdc] sm:$0xf]
          %v848 = vld [vmem:[#allocation10 + $0xe0] sm:$0xf]
          %v849 = vld [vmem:[#allocation10 + $0xe4] sm:$0xf]
          %v850 = vld [vmem:[#allocation10 + $0xe8] sm:$0xf]
          %v851 = vld [vmem:[#allocation10 + $0xec] sm:$0xf]
          %v852 = vld [vmem:[#allocation10 + $0xf0] sm:$0xf]
          %v853 = vld [vmem:[#allocation10 + $0xf4] sm:$0xf]
          %v854 = vld [vmem:[#allocation10 + $0xf8] sm:$0xf]
          %v855 = vld [vmem:[#allocation10 + $0xfc] sm:$0xf]
          %v856 = vld [vmem:[%s6] sm:$0x1]
          %v858 = vlaneseq
          %v859 = vshrl.u32 %v858, 7
          %v860 = vsub.s32 0, %v859
          %v861 = vrot.slane %v856, %v860
          %v927 = vunpack.c.l.b16 %v792
          %v928 = vunpack.c.l.b16 %v793
          %v929 = vunpack.c.l.b16 %v794
          %v930 = vunpack.c.l.b16 %v795
          %v931 = vunpack.c.l.b16 %v796
          %v932 = vunpack.c.l.b16 %v797
          %v933 = vunpack.c.l.b16 %v798
          %v934 = vunpack.c.l.b16 %v799
          %v935 = vunpack.c.l.b16 %v800
          %v936 = vunpack.c.l.b16 %v801
          %v937 = vunpack.c.l.b16 %v802
          %v938 = vunpack.c.l.b16 %v803
          %v939 = vunpack.c.l.b16 %v804
          %v940 = vunpack.c.l.b16 %v805
          %v941 = vunpack.c.l.b16 %v806
          %v942 = vunpack.c.l.b16 %v807
          %v943 = vunpack.c.l.b16 %v808
          %v944 = vunpack.c.l.b16 %v809
          %v945 = vunpack.c.l.b16 %v810
          %v946 = vunpack.c.l.b16 %v811
          %v947 = vunpack.c.l.b16 %v812
          %v948 = vunpack.c.l.b16 %v813
          %v949 = vunpack.c.l.b16 %v814
          %v950 = vunpack.c.l.b16 %v815
          %v951 = vunpack.c.l.b16 %v816
          %v952 = vunpack.c.l.b16 %v817
          %v953 = vunpack.c.l.b16 %v818
          %v954 = vunpack.c.l.b16 %v819
          %v955 = vunpack.c.l.b16 %v820
          %v956 = vunpack.c.l.b16 %v821
          %v957 = vunpack.c.l.b16 %v822
          %v958 = vunpack.c.l.b16 %v823
          %v959 = vunpack.c.l.b16 %v824
          %v960 = vunpack.c.l.b16 %v825
          %v961 = vunpack.c.l.b16 %v826
          %v962 = vunpack.c.l.b16 %v827
          %v963 = vunpack.c.l.b16 %v828
          %v964 = vunpack.c.l.b16 %v829
          %v965 = vunpack.c.l.b16 %v830
          %v966 = vunpack.c.l.b16 %v831
          %v967 = vunpack.c.l.b16 %v832
          %v968 = vunpack.c.l.b16 %v833
          %v969 = vunpack.c.l.b16 %v834
          %v970 = vunpack.c.l.b16 %v835
          %v971 = vunpack.c.l.b16 %v836
          %v972 = vunpack.c.l.b16 %v837
          %v973 = vunpack.c.l.b16 %v838
          %v974 = vunpack.c.l.b16 %v839
          %v975 = vunpack.c.l.b16 %v840
          %v976 = vunpack.c.l.b16 %v841
          %v977 = vunpack.c.l.b16 %v842
          %v978 = vunpack.c.l.b16 %v843
          %v979 = vunpack.c.l.b16 %v844
          %v980 = vunpack.c.l.b16 %v845
          %v981 = vunpack.c.l.b16 %v846
          %v982 = vunpack.c.l.b16 %v847
          %v983 = vunpack.c.l.b16 %v848
          %v984 = vunpack.c.l.b16 %v849
          %v985 = vunpack.c.l.b16 %v850
          %v986 = vunpack.c.l.b16 %v851
          %v987 = vunpack.c.l.b16 %v852
          %v988 = vunpack.c.l.b16 %v853
          %v989 = vunpack.c.l.b16 %v854
          %v990 = vunpack.c.l.b16 %v855
          %v991 = vpack.c.b16 %v928, %v927
          %v992 = vpack.c.b16 %v930, %v929
          %v993 = vpack.c.b16 %v932, %v931
          %v994 = vpack.c.b16 %v934, %v933
          %v995 = vpack.c.b16 %v936, %v935
          %v996 = vpack.c.b16 %v938, %v937
          %v997 = vpack.c.b16 %v940, %v939
          %v998 = vpack.c.b16 %v942, %v941
          %v999 = vpack.c.b16 %v944, %v943
          %v1000 = vpack.c.b16 %v946, %v945
          %v1001 = vpack.c.b16 %v948, %v947
          %v1002 = vpack.c.b16 %v950, %v949
          %v1003 = vpack.c.b16 %v952, %v951
          %v1004 = vpack.c.b16 %v954, %v953
          %v1005 = vpack.c.b16 %v956, %v955
          %v1006 = vpack.c.b16 %v958, %v957
          %v1007 = vpack.c.b16 %v960, %v959
          %v1008 = vpack.c.b16 %v962, %v961
          %v1009 = vpack.c.b16 %v964, %v963
          %v1010 = vpack.c.b16 %v966, %v965
          %v1011 = vpack.c.b16 %v968, %v967
          %v1012 = vpack.c.b16 %v970, %v969
          %v1013 = vpack.c.b16 %v972, %v971
          %v1014 = vpack.c.b16 %v974, %v973
          %v1015 = vpack.c.b16 %v976, %v975
          %v1016 = vpack.c.b16 %v978, %v977
          %v1017 = vpack.c.b16 %v980, %v979
          %v1018 = vpack.c.b16 %v982, %v981
          %v1019 = vpack.c.b16 %v984, %v983
          %v1020 = vpack.c.b16 %v986, %v985
          %v1021 = vpack.c.b16 %v988, %v987
          %v1022 = vpack.c.b16 %v990, %v989
          %1055 = vmatprep.subr.bf16.mxu0 0
          %1056 = vmatpush1.bf16.msra.mxu0 %v991
          %1057 = vmatprep.subr.bf16.mxu0 0
          %1058 = vmatpush1.bf16.msra.mxu0 %v992
          %1059 = vmatprep.subr.bf16.mxu0 0
          %1060 = vmatpush1.bf16.msra.mxu0 %v993
          %1061 = vmatprep.subr.bf16.mxu0 0
          %1062 = vmatpush1.bf16.msra.mxu0 %v994
          %1063 = vmatprep.subr.bf16.mxu0 0
          %1064 = vmatpush1.bf16.msra.mxu0 %v995
          %1065 = vmatprep.subr.bf16.mxu0 0
          %1066 = vmatpush1.bf16.msra.mxu0 %v996
          %1067 = vmatprep.subr.bf16.mxu0 0
          %1068 = vmatpush1.bf16.msra.mxu0 %v997
          %1069 = vmatprep.subr.bf16.mxu0 0
          %1070 = vmatpush1.bf16.msra.mxu0 %v998
          %1071 = vmatprep.subr.bf16.mxu0 0
          %1072 = vmatpush1.bf16.msra.mxu0 %v999
          %1073 = vmatprep.subr.bf16.mxu0 0
          %1074 = vmatpush1.bf16.msra.mxu0 %v1000
          %1075 = vmatprep.subr.bf16.mxu0 0
          %1076 = vmatpush1.bf16.msra.mxu0 %v1001
          %1077 = vmatprep.subr.bf16.mxu0 0
          %1078 = vmatpush1.bf16.msra.mxu0 %v1002
          %1079 = vmatprep.subr.bf16.mxu0 0
          %1080 = vmatpush1.bf16.msra.mxu0 %v1003
          %1081 = vmatprep.subr.bf16.mxu0 0
          %1082 = vmatpush1.bf16.msra.mxu0 %v1004
          %1083 = vmatprep.subr.bf16.mxu0 0
          %1084 = vmatpush1.bf16.msra.mxu0 %v1005
          %1085 = vmatprep.subr.bf16.mxu0 0
          %1086 = vmatpush1.bf16.msra.mxu0 %v1006
          %1087 = vmatprep.mubr.bf16.mxu0 %v789
          %1088 = vmatmul.mubr.bf16.gmra.mrb[0].mxu0 %v788
          %v1089 = vpop.f32.mrb[0].mxu0
          %v1090 = vadd.f32 %v861, %v1089
          %v1091 = vpop.f32.mrb[0].mxu0
          %v1092 = vpop.f32.mrb[0].mxu0
          %v1093 = vadd.f32 %v861, %v1092
          %v1094 = vpop.f32.mrb[0].mxu0
          %1095 = vdwg.mxu0
          %1096 = vmatprep.subr.bf16.mxu0 0
          %1097 = vmatpush1.bf16.msra.mxu0 %v1007
          %1098 = vmatprep.subr.bf16.mxu0 0
          %1099 = vmatpush1.bf16.msra.mxu0 %v1008
          %1100 = vmatprep.subr.bf16.mxu0 0
          %1101 = vmatpush1.bf16.msra.mxu0 %v1009
          %1102 = vmatprep.subr.bf16.mxu0 0
          %1103 = vmatpush1.bf16.msra.mxu0 %v1010
          %1104 = vmatprep.subr.bf16.mxu0 0
          %1105 = vmatpush1.bf16.msra.mxu0 %v1011
          %1106 = vmatprep.subr.bf16.mxu0 0
          %1107 = vmatpush1.bf16.msra.mxu0 %v1012
          %1108 = vmatprep.subr.bf16.mxu0 0
          %1109 = vmatpush1.bf16.msra.mxu0 %v1013
          %1110 = vmatprep.subr.bf16.mxu0 0
          %1111 = vmatpush1.bf16.msra.mxu0 %v1014
          %1112 = vmatprep.subr.bf16.mxu0 0
          %1113 = vmatpush1.bf16.msra.mxu0 %v1015
          %1114 = vmatprep.subr.bf16.mxu0 0
          %1115 = vmatpush1.bf16.msra.mxu0 %v1016
          %1116 = vmatprep.subr.bf16.mxu0 0
          %1117 = vmatpush1.bf16.msra.mxu0 %v1017
          %1118 = vmatprep.subr.bf16.mxu0 0
          %1119 = vmatpush1.bf16.msra.mxu0 %v1018
          %1120 = vmatprep.subr.bf16.mxu0 0
          %1121 = vmatpush1.bf16.msra.mxu0 %v1019
          %1122 = vmatprep.subr.bf16.mxu0 0
          %1123 = vmatpush1.bf16.msra.mxu0 %v1020
          %1124 = vmatprep.subr.bf16.mxu0 0
          %1125 = vmatpush1.bf16.msra.mxu0 %v1021
          %1126 = vmatprep.subr.bf16.mxu0 0
          %1127 = vmatpush1.bf16.msra.mxu0 %v1022
          %1128 = vmatprep.mubr.bf16.mxu0 %v791
          %1129 = vmatmul.mubr.bf16.gmra.mrb[0].mxu0 %v790
          %v1130 = vpop.f32.mrb[0].mxu0
          %v1131 = vadd.f32 %v1090, %v1130
          %v1132 = vpop.f32.mrb[0].mxu0
          %v1133 = vpop.f32.mrb[0].mxu0
          %v1134 = vadd.f32 %v1093, %v1133
          %v1135 = vpop.f32.mrb[0].mxu0
          %1136 = vdwg.mxu0
          %1137 = vst [vmem:[%s431] sm:$0xff] %v1131
          %1138 = vst [vmem:[%s431 + $0x8] sm:$0xff] %v1134
          %v1139 = vadd.f32 %v1131, %v1134
          %v1140 = vrot.slane %v1139, 4
          %v1141 = vadd.f32 %v1139, %v1140
          %v1142 = vrot.slane %v1141, 2
          %v1143 = vadd.f32 %v1141, %v1142
          %v1144 = vrot.slane %v1143, 1
          %v1145 = vadd.f32 %v1143, %v1144
          %v1146 = vmul.f32 %v1131, %v1131
          %v1147 = vmul.f32 %v1134, %v1134
          %v1148 = vadd.f32 %v1146, %v1147
          %v1149 = vrot.slane %v1148, 4
          %v1150 = vadd.f32 %v1148, %v1149
          %v1151 = vrot.slane %v1150, 2
          %v1152 = vadd.f32 %v1150, %v1151
          %v1153 = vrot.slane %v1152, 1
          %v1154 = vadd.f32 %v1152, %v1153
          %vm1155 = vcmask 1040384
          %v1156 = vsel %vm1155, %v1145, %v1154
          %1157 = vst [vmem:[%s438] sm:$0x3] %v1156
        $region76: #{tpu_custom_call.1} parent=47 // pred_fallthru
          _
        %s1158 = sand.u32 %s226, 1
        %s1159 = scalar_lea.sflag [#allocation6], %s1158
        %s1160 = sand.u32 %s226, 1
        %s1161 = smul.addr %s1160, 16
        %s1162 = scalar_lea.vmem [#allocation12], %s1161
        %s1163 = sand.u32 %s254, 1
        %s1164 = scalar_lea.sflag [#allocation14], %s1163
        %s1165 = sand.u32 %s254, 1
        %s1166 = smul.addr %s1165, 2
        %s1167 = scalar_lea.vmem [#allocation13], %s1166
        // Predicated region
        $region77: #{tpu_custom_call.1} parent=47 // pred_check
          %p1168 = pneg %p236
        $region78: #{tpu_custom_call.1} parent=47 // pred_check_branch
          %1170 = sbr.rel (%p1168) target = $region80
        $region79: #{tpu_custom_call.1} parent=47 // pred_region
          %s1171 = smul.u32 2, %s40
          %s1173 = ssub.s32 256, 256
          %1174 = vsyncadd %s1159, %s1173
          %s1175 = smul.addr %s39, 2
          %s1176 = sadd.s32 %s1171, %s1175
          %s1177 = smul.addr %s1176, 128
          %s1178 = scalar_lea.hbm %s7, %s1177
          %s1179 = sshll.u32 %s1162, 4
          %s1180 = int_to_ptr.vmem [resolvable:$true] %s1179
          %1185 = dma.vmem_to_hbm [thread:$0]  %s1180, 256, %s1178, %s1159, 128, 128, 8
        $region80: #{tpu_custom_call.1} parent=47 // pred_fallthru
          _
        // Predicated region
        $region81: #{tpu_custom_call.1} parent=47 // pred_check
          %p1186 = pneg %p264
        $region82: #{tpu_custom_call.1} parent=47 // pred_check_branch
          %1188 = sbr.rel (%p1186) target = $region84
        $region83: #{tpu_custom_call.1} parent=47 // pred_region
          %s1190 = ssub.s32 32, 32
          %1191 = vsyncadd %s1164, %s1190
          %s1192 = sadd.s32 %s40, %s39
          %s1193 = smul.addr %s1192, 32
          %s1194 = scalar_lea.hbm %s8, %s1193
          %s1196 = sshll.u32 %s1167, 4
          %s1197 = int_to_ptr.vmem [resolvable:$true] %s1196
          %1199 = dma.vmem_to_hbm [thread:$0]  %s1197, 32, %s1194, %s1164
        $region84: #{tpu_custom_call.1} parent=47 // pred_fallthru
          _
      $region48: #{tpu_custom_call.1} parent=5 // pred_fallthru
        _
      %p1200 = scmp.le.s32.totalorder 2, %s29
      // Predicated region
      $region85: #{tpu_custom_call.1} parent=5 // pred_check
        %p1201 = pneg %p1200
      $region86: #{tpu_custom_call.1} parent=5 // pred_check_branch
        %1203 = sbr.rel (%p1201) target = $region88
      $region87: #{tpu_custom_call.1} parent=5 // pred_region
        %s1204 = ssub.s32 %s29, 2
        // Predicated region
        $region89: #{tpu_custom_call.1} parent=87 // pred_check
          %p1205 = pneg %p242
        $region90: #{tpu_custom_call.1} parent=87 // pred_check_branch
          %1207 = sbr.rel (%p1205) target = $region92
        $region91: #{tpu_custom_call.1} parent=87 // pred_region
          %s1208 = sand.u32 %s227, 1
          %s1209 = scalar_lea.sflag [#allocation6], %s1208
          %s1210 = sand.u32 %s227, 1
          %s1211 = smul.addr %s1210, 16
          %s1212 = scalar_lea.vmem [#allocation12], %s1211
          %1213 = dma.done %s1209, 256
        $region92: #{tpu_custom_call.1} parent=87 // pred_fallthru
          _
        // Predicated region
        $region93: #{tpu_custom_call.1} parent=87 // pred_check
          %p1214 = pneg %p270
        $region94: #{tpu_custom_call.1} parent=87 // pred_check_branch
          %1216 = sbr.rel (%p1214) target = $region96
        $region95: #{tpu_custom_call.1} parent=87 // pred_region
          %s1217 = sand.u32 %s255, 1
          %s1218 = scalar_lea.sflag [#allocation14], %s1217
          %s1219 = sand.u32 %s255, 1
          %s1220 = smul.addr %s1219, 2
          %s1221 = scalar_lea.vmem [#allocation13], %s1220
          %1222 = dma.done %s1218, 32
        $region96: #{tpu_custom_call.1} parent=87 // pred_fallthru
          _
      $region88: #{tpu_custom_call.1} parent=5 // pred_fallthru
        _
    $region6: #{tpu_custom_call.1} parent=1 // loop_footer
      %s33 = sadd.s32 1, %s29
    $region7: #{tpu_custom_call.1} parent=1 // loop_footer_branch
      %28 = sbr.rel target = $region3
    $region8: #{tpu_custom_call.1} parent=1 // loop_exit
      _
    %1223 = vsyncpa [#allocation5], 1
    %s1224 = scalar_lea.sflag [#allocation5], 1
    %1225 = vsyncpa %s1224, 1
    %1226 = vsyncpa [#allocation8], 1
    %s1227 = scalar_lea.sflag [#allocation8], 1
    %1228 = vsyncpa %s1227, 1
    %1229 = vsyncpa [#allocation11], 1
    %1230 = vsyncpa [#allocation6], 1
    %s1231 = scalar_lea.sflag [#allocation6], 1
    %1232 = vsyncpa %s1231, 1
    %1233 = vsyncpa [#allocation14], 1
    %s1234 = scalar_lea.sflag [#allocation14], 1
    %1235 = vsyncpa %s1234, 1

</llo_original>
